<compile_context>
chip_gen: v5e
topology: v5e:2x2
jax: 0.10.0
libtpu: 0.0.40
codegen_flags: <defaults>
</compile_context>

<pallas_src>
import functools

import numpy as np
import jax
import jax.numpy as jnp
from jax.experimental import pallas as pl
from jax.experimental.pallas import tpu as pltpu


def _round_up(x, m):
    return (x + m - 1) // m * m


def _fused_forward_kernel(state_ref, pref_ref, w1s_ref, w1p_ref, b1_ref,
                          wga_ref, bga_ref, w3_ref, b3_ref, out_ref, *,
                          action_size, reward_size):
    """One group-block tile; row (j, i) of the tile <-> batch row j*s_num + g0+i."""
    A, R = action_size, reward_size
    out_dim = A * R
    w_num, tg, _ = state_ref.shape
    h2p = wga_ref.shape[1] // 2
    out_pad = w3_ref.shape[1]
    M = w_num * tg                                   # MXU M dim of this tile

    def flat(ref):                                   # [w_num, tg, D] -> [M, D]
        x = ref[...]
        if w_num == 1:
            return x[0]
        return jnp.concatenate([x[j] for j in range(w_num)], axis=0)

    s = flat(state_ref)                              # [M, S]
    w = flat(pref_ref)                               # [M, R]

    # affine1: w1 row-split at pack time (no [state|pref] lane concat); the h1
    # output / downstream K is zero-padded to a 256 multiple.
    h1 = jnp.maximum(
        jnp.dot(s, w1s_ref[...], preferred_element_type=jnp.float32)
        + jnp.dot(w, w1p_ref[...], preferred_element_type=jnp.float32)
        + b1_ref[...], 0.0)

    # gates + affine2 fused into ONE MXU pass (gate x500 folded into wga/bga).
    z = (jnp.dot(h1.astype(wga_ref.dtype), wga_ref[...],
                 preferred_element_type=jnp.float32) + bga_ref[...])
    # sigmoid = 1/(1+exp(-z)); exp + approximate reciprocal both use EUP slots.
    # The clip keeps exp() finite under the x500 hard-gate scale.
    zg = jnp.clip(z[:, :h2p], -60.0, 60.0)
    g = pl.reciprocal(1.0 + jnp.exp(-zg), approx=True)
    h2 = jnp.maximum(z[:, h2p:], 0.0)
    # Padded lanes stay zero because the relu(affine2) half is zero there AND
    # the matching w3 rows are zero-padded (sigmoid of 0 is 0.5, not 0).
    gated = h2 * g

    # affine3, single lane-dense packed output:
    #   cols [0, A*R)           q, interleaved (a*R + r) layout
    #   cols [A*R, 2*A*R)       q, reward-grouped (r*A + a) layout (epilogue)
    #   cols [2*A*R, 2*A*R+R)   hq (filled below)
    qp = (jnp.dot(gated.astype(w3_ref.dtype), w3_ref[...],
                  preferred_element_type=jnp.float32) + b3_ref[...])

    # ------------------ envelope-H epilogue (tile-local) -------------------
    # prod[k, j'*A + a] = sum_r q[row j'*tg + (k % tg), a, r] * w[k, r]; the
    # tile holds complete preference groups so no cross-tile rows are needed.
    nc = A * w_num
    cand = []
    for r in range(R):
        qr = qp[:, out_dim + r * A: out_dim + (r + 1) * A]           # [M, A]
        pieces = []
        for j in range(w_num):
            blk = qr[j * tg:(j + 1) * tg, :]                         # [tg, A]
            pieces.append(jnp.concatenate([blk] * w_num, axis=0))    # [M, A]
        cand.append(jnp.concatenate(pieces, axis=1))                 # [M, nc]
    # TODO(synk): for very large tiles, build cand with a one-hot selection
    # matmul on the (idle) MXU instead of sublane concats.

    prod = cand[0] * w[:, 0:1]
    for r in range(1, R):
        prod = prod + cand[r] * w[:, r:r + 1]

    # First-argmax via max + iota + min, masked-sum gather, and write hq into
    # the spare lanes of qp so the kernel has a single lane-dense output.
    cols = jax.lax.broadcasted_iota(jnp.int32, (M, nc), 1).astype(jnp.float32)
    mx = jnp.max(prod, axis=1, keepdims=True)
    first = jnp.min(jnp.where(prod >= mx, cols, float(nc)), axis=1,
                    keepdims=True)
    sel = cols == first                                # one-hot per row
    lane = jax.lax.broadcasted_iota(jnp.int32, (M, out_pad), 1)
    for r in range(R):
        hq_r = jnp.sum(jnp.where(sel, cand[r], 0.0), axis=1, keepdims=True)
        qp = jnp.where(lane == (2 * out_dim + r), hq_r, qp)

    for j in range(w_num):
        out_ref[j] = qp[j * tg:(j + 1) * tg, :]


def envelope_linear_cqn_forward(state, preference, packed, *, action_size,
                                reward_size, w_num=1, group_tile=None):
    """state: [B, S], preference: [B, R] with B = s_num * w_num.
    Returns (hq [B, R], q [B, A, R]) like the torch module."""
    B, S = state.shape
    assert B % w_num == 0
    s_num = B // w_num
    A, R = action_size, reward_size
    assert preference.shape == (B, R)
    out_dim = A * R
    out_pad = packed["b3"].shape[1]

    tg = s_num if group_tile is None else group_tile
    assert s_num % tg == 0 and (tg == s_num or tg % 8 == 0), \
        "group_tile must divide s_num and be s_num or a multiple of 8"
    grid = (s_num // tg,)

    # View the batch as [w_num, s_num, ...]; batch row b = j*s_num + i maps to
    # (j, i).  A grid step owns a contiguous block of i's, i.e. complete
    # preference groups, so the H gather stays inside the tile.
    state3 = state.astype(jnp.float32).reshape(w_num, s_num, S)
    pref3 = preference.astype(jnp.float32).reshape(w_num, s_num, R)

    kernel = functools.partial(_fused_forward_kernel,
                               action_size=A, reward_size=R)

    def tile_spec(d):
        return pl.BlockSpec((w_num, tg, d), lambda g: (0, g, 0))

    def full_spec(arr):       # weights: full block, resident across grid steps
        return pl.BlockSpec(arr.shape, lambda g: (0,) * arr.ndim)

    out3 = pl.pallas_call(
        kernel,
        out_shape=jax.ShapeDtypeStruct((w_num, s_num, out_pad), jnp.float32),
        grid=grid,
        in_specs=[tile_spec(S), tile_spec(R),
                  full_spec(packed["w1s"]), full_spec(packed["w1p"]),
                  full_spec(packed["b1"]), full_spec(packed["wga"]),
                  full_spec(packed["bga"]), full_spec(packed["w3"]),
                  full_spec(packed["b3"])],
        out_specs=tile_spec(out_pad),
        compiler_params=pltpu.CompilerParams(
            dimension_semantics=("parallel",)),
    )(state3, pref3, packed["w1s"], packed["w1p"], packed["b1"],
      packed["wga"], packed["bga"], packed["w3"], packed["b3"])

    flat = out3.reshape(B, out_pad)      # row order j*s_num + i == natural b
    q = flat[:, :out_dim].reshape(B, A, R)
    hq = flat[:, 2 * out_dim:2 * out_dim + R]
    return hq, q


def init_params(key, state_size, action_size, reward_size):
    """PyTorch-style uniform(-1/sqrt(fan_in), 1/sqrt(fan_in)) init."""
    d_in = state_size + reward_size
    h1 = d_in * 40
    h2 = d_in * 60
    d_out = action_size * reward_size

    def linear(k, fan_in, fan_out):
        kw, kb = jax.random.split(k)
        bound = 1.0 / (fan_in ** 0.5)
        w = jax.random.uniform(kw, (fan_in, fan_out), jnp.float32, -bound, bound)
        b = jax.random.uniform(kb, (1, fan_out), jnp.float32, -bound, bound)
        return w, b

    k1, k2, k3, k4 = jax.random.split(key, 4)
    w1, b1 = linear(k1, d_in, h1)   # affine1
    wg, bg = linear(k2, h1, h2)     # gates
    w2, b2 = linear(k3, h1, h2)     # affine2
    w3, b3 = linear(k4, h2, d_out)  # affine3
    return dict(w1=w1, b1=b1, wg=wg, bg=bg, w2=w2, b2=b2, w3=w3, b3=b3)


def pack_params(params, *, state_size, action_size, reward_size,
                weight_dtype=jnp.bfloat16):
    """One-time packing of the torch-style parameters for the fused kernel."""
    A, R = action_size, reward_size
    S = state_size
    d_in = S + R
    h1, h2 = d_in * 40, d_in * 60
    h1p = _round_up(h1, 256)                 # MXU-aligned contraction dim
    h2p = _round_up(h2, 128)
    out_dim = A * R
    out_pad = max(128, _round_up(2 * out_dim + R, 128))

    # affine1 split at row S (no in-kernel concat) and padded to h1p columns.
    w1s = jnp.zeros((S, h1p), jnp.float32).at[:, :h1].set(params["w1"][:S])
    w1p = jnp.zeros((R, h1p), jnp.float32).at[:, :h1].set(params["w1"][S:])
    b1 = jnp.zeros((1, h1p), jnp.float32).at[:, :h1].set(params["b1"])

    # gates | affine2 fused; gate x500 folded in; each half padded to h2p.
    wga = jnp.zeros((h1p, 2 * h2p), jnp.float32)
    wga = wga.at[:h1, :h2].set(params["wg"] * 500.0)
    wga = wga.at[:h1, h2p:h2p + h2].set(params["w2"])
    bga = jnp.zeros((1, 2 * h2p), jnp.float32)
    bga = bga.at[:, :h2].set(params["bg"] * 500.0)
    bga = bga.at[:, h2p:h2p + h2].set(params["b2"])

    # affine3 lane-dense: interleaved q, reward-grouped q, spare hq lanes.
    grp = np.arange(out_dim).reshape(A, R).T.reshape(-1)  # grouped <- interleaved
    w3p = jnp.zeros((h2p, out_pad), jnp.float32)
    w3p = w3p.at[:h2, :out_dim].set(params["w3"])
    w3p = w3p.at[:h2, out_dim:2 * out_dim].set(params["w3"][:, grp])
    b3p = jnp.zeros((1, out_pad), jnp.float32)
    b3p = b3p.at[:, :out_dim].set(params["b3"])
    b3p = b3p.at[:, out_dim:2 * out_dim].set(params["b3"][:, grp])

    return dict(w1s=w1s, w1p=w1p, b1=b1,                 # tiny: keep f32
                wga=wga.astype(weight_dtype), bga=bga,
                w3=w3p.astype(weight_dtype), b3=b3p)


if __name__ == "__main__":
    # reward_size stays 2, matching the torch module's hardcoded view(-1, 2).
    state_size, action_size, reward_size = 4, 4, 2
    w_num, s_num = 2, 4
    B = s_num * w_num

    key = jax.random.PRNGKey(0)
    kp, ks, kw = jax.random.split(key, 3)
    params = init_params(kp, state_size, action_size, reward_size)
    packed = pack_params(params, state_size=state_size,
                         action_size=action_size, reward_size=reward_size)

    state = jax.random.normal(ks, (B, state_size), jnp.float32)
    pref = jnp.abs(jax.random.normal(kw, (B, reward_size), jnp.float32))
    pref = pref / jnp.sum(pref, axis=1, keepdims=True)

    hq, q = envelope_linear_cqn_forward(
        state, pref, packed,
        action_size=action_size, reward_size=reward_size, w_num=w_num)
    jax.block_until_ready((hq, q))
    assert hq.shape == (B, reward_size)
    assert q.shape == (B, action_size, reward_size)

    # --- reference MLP using the SAME packed (bf16) weights -----------------
    out_dim = action_size * reward_size
    h2p = packed["wga"].shape[1] // 2
    wd = packed["wga"].dtype
    h1r = jax.nn.relu(state @ packed["w1s"] + pref @ packed["w1p"]
                      + packed["b1"])
    z = jnp.dot(h1r.astype(wd), packed["wga"],
                preferred_element_type=jnp.float32) + packed["bga"]
    gr = 1.0 / (1.0 + jnp.exp(-jnp.clip(z[:, :h2p], -60.0, 60.0)))
    gated = jax.nn.relu(z[:, h2p:]) * gr
    q_ref = (jnp.dot(gated.astype(wd), packed["w3"],
                     preferred_element_type=jnp.float32)
             + packed["b3"])[:, :out_dim]
    assert jnp.allclose(q.reshape(B, -1), q_ref, atol=1e-2, rtol=1e-2)

    # --- reference envelope-H applied to the kernel's own q -----------------
    def h_ref(qv, w):
        A, R = action_size, reward_size
        idx = jnp.concatenate(
            [jnp.arange(i, B + i, s_num) for i in range(s_num)], axis=0)
        reQ = qv.reshape(B, A * R)[idx].reshape(B * A, R)
        reQ_ext = jnp.tile(reQ, (w_num, 1))
        w_ext = jnp.repeat(w, A * w_num, axis=0)
        prodv = jnp.sum(reQ_ext * w_ext, axis=1).reshape(B, A * w_num)
        rows = jnp.arange(B) * (A * w_num) + jnp.argmax(prodv, axis=1)
        return reQ_ext[rows]

    hq_ref = h_ref(q, pref)
    assert jnp.allclose(hq, hq_ref, atol=1e-3, rtol=1e-3)

    print("KERNEL_OK")
</pallas_src>

<mosaic_0001>
module attributes {stable_mosaic.version = 11 : i64} {
  func.func @_fused_forward_kernel(%arg0: i32, %arg1: memref<2x4x4xf32, #tpu.memory_space<vmem>>, %arg2: memref<2x4x2xf32, #tpu.memory_space<vmem>>, %arg3: memref<4x256xf32, #tpu.memory_space<vmem>>, %arg4: memref<2x256xf32, #tpu.memory_space<vmem>>, %arg5: memref<1x256xf32, #tpu.memory_space<vmem>>, %arg6: memref<256x768xbf16, #tpu.memory_space<vmem>>, %arg7: memref<1x768xf32, #tpu.memory_space<vmem>>, %arg8: memref<384x128xbf16, #tpu.memory_space<vmem>>, %arg9: memref<1x128xf32, #tpu.memory_space<vmem>>, %arg10: memref<2x4x128xf32, #tpu.memory_space<vmem>>) attributes {dimension_semantics = [#tpu.dimension_semantics<parallel>], iteration_bounds = array<i64: 1>, scalar_prefetch = 0 : i64, scratch_operands = 0 : i64, tpu.core_type = #tpu.core_type<tc>, window_params = [{transform_indices = @transform_0, window_bounds = array<i64: 2, 4, 4>}, {transform_indices = @transform_1, window_bounds = array<i64: 2, 4, 2>}, {pipeline_mode = #tpu.pipeline_mode<synchronous>, transform_indices = @transform_2, window_bounds = array<i64: 4, 256>}, {pipeline_mode = #tpu.pipeline_mode<synchronous>, transform_indices = @transform_3, window_bounds = array<i64: 2, 256>}, {pipeline_mode = #tpu.pipeline_mode<synchronous>, transform_indices = @transform_4, window_bounds = array<i64: 1, 256>}, {pipeline_mode = #tpu.pipeline_mode<synchronous>, transform_indices = @transform_5, window_bounds = array<i64: 256, 768>}, {pipeline_mode = #tpu.pipeline_mode<synchronous>, transform_indices = @transform_6, window_bounds = array<i64: 1, 768>}, {pipeline_mode = #tpu.pipeline_mode<synchronous>, transform_indices = @transform_7, window_bounds = array<i64: 384, 128>}, {pipeline_mode = #tpu.pipeline_mode<synchronous>, transform_indices = @transform_8, window_bounds = array<i64: 1, 128>}, {transform_indices = @transform_9, window_bounds = array<i64: 2, 4, 128>}]} {
    %c0 = arith.constant 0 : index
    %c0_0 = arith.constant 0 : index
    %c0_1 = arith.constant 0 : index
    %0 = vector.load %arg1[%c0, %c0_0, %c0_1] : memref<2x4x4xf32, #tpu.memory_space<vmem>>, vector<2x4x4xf32>
    %1 = vector.extract_strided_slice %0 {offsets = [0, 0, 0], sizes = [1, 4, 4], strides = [1, 1, 1]} : vector<2x4x4xf32> to vector<1x4x4xf32>
    %2 = vector.shape_cast %1 : vector<1x4x4xf32> to vector<4x4xf32>
    %3 = vector.extract_strided_slice %0 {offsets = [1, 0, 0], sizes = [1, 4, 4], strides = [1, 1, 1]} : vector<2x4x4xf32> to vector<1x4x4xf32>
    %4 = vector.shape_cast %3 : vector<1x4x4xf32> to vector<4x4xf32>
    %5 = tpu.concatenate %2, %4 in 0 : vector<4x4xf32>, vector<4x4xf32> -> vector<8x4xf32>
    %c0_2 = arith.constant 0 : index
    %c0_3 = arith.constant 0 : index
    %c0_4 = arith.constant 0 : index
    %6 = vector.load %arg2[%c0_2, %c0_3, %c0_4] : memref<2x4x2xf32, #tpu.memory_space<vmem>>, vector<2x4x2xf32>
    %7 = vector.extract_strided_slice %6 {offsets = [0, 0, 0], sizes = [1, 4, 2], strides = [1, 1, 1]} : vector<2x4x2xf32> to vector<1x4x2xf32>
    %8 = vector.shape_cast %7 : vector<1x4x2xf32> to vector<4x2xf32>
    %9 = vector.extract_strided_slice %6 {offsets = [1, 0, 0], sizes = [1, 4, 2], strides = [1, 1, 1]} : vector<2x4x2xf32> to vector<1x4x2xf32>
    %10 = vector.shape_cast %9 : vector<1x4x2xf32> to vector<4x2xf32>
    %11 = tpu.concatenate %8, %10 in 0 : vector<4x2xf32>, vector<4x2xf32> -> vector<8x2xf32>
    %c0_5 = arith.constant 0 : index
    %c0_6 = arith.constant 0 : index
    %12 = vector.load %arg3[%c0_5, %c0_6] : memref<4x256xf32, #tpu.memory_space<vmem>>, vector<4x256xf32>
    %cst = arith.constant dense<0.000000e+00> : vector<8x256xf32>
    %13 = tpu.matmul %5, %12, %cst {dimension_numbers = #tpu.dot_dimension_numbers<[1], [0], [0], [1], [0, 0, 1, 1], [], []>} : vector<8x4xf32>, vector<4x256xf32>, vector<8x256xf32> -> vector<8x256xf32>
    %c0_7 = arith.constant 0 : index
    %c0_8 = arith.constant 0 : index
    %14 = vector.load %arg4[%c0_7, %c0_8] : memref<2x256xf32, #tpu.memory_space<vmem>>, vector<2x256xf32>
    %cst_9 = arith.constant dense<0.000000e+00> : vector<8x256xf32>
    %15 = tpu.matmul %11, %14, %cst_9 {dimension_numbers = #tpu.dot_dimension_numbers<[1], [0], [0], [1], [0, 0, 1, 1], [], []>} : vector<8x2xf32>, vector<2x256xf32>, vector<8x256xf32> -> vector<8x256xf32>
    %16 = arith.addf %13, %15 : vector<8x256xf32>
    %c0_10 = arith.constant 0 : index
    %c0_11 = arith.constant 0 : index
    %17 = vector.load %arg5[%c0_10, %c0_11] : memref<1x256xf32, #tpu.memory_space<vmem>>, vector<1x256xf32>
    %18 = vector.broadcast %17 : vector<1x256xf32> to vector<8x256xf32>
    %19 = arith.addf %16, %18 : vector<8x256xf32>
    %cst_12 = arith.constant 0.000000e+00 : f32
    %20 = vector.broadcast %cst_12 : f32 to vector<8x256xf32>
    %21 = arith.maximumf %19, %20 : vector<8x256xf32>
    %22 = arith.truncf %21 : vector<8x256xf32> to vector<8x256xbf16>
    %c0_13 = arith.constant 0 : index
    %c0_14 = arith.constant 0 : index
    %23 = vector.load %arg6[%c0_13, %c0_14] : memref<256x768xbf16, #tpu.memory_space<vmem>>, vector<256x768xbf16>
    %cst_15 = arith.constant dense<0.000000e+00> : vector<8x768xf32>
    %24 = tpu.matmul %22, %23, %cst_15 {dimension_numbers = #tpu.dot_dimension_numbers<[1], [0], [0], [1], [0, 0, 1, 1], [], []>} : vector<8x256xbf16>, vector<256x768xbf16>, vector<8x768xf32> -> vector<8x768xf32>
    %c0_16 = arith.constant 0 : index
    %c0_17 = arith.constant 0 : index
    %25 = vector.load %arg7[%c0_16, %c0_17] : memref<1x768xf32, #tpu.memory_space<vmem>>, vector<1x768xf32>
    %26 = vector.broadcast %25 : vector<1x768xf32> to vector<8x768xf32>
    %27 = arith.addf %24, %26 : vector<8x768xf32>
    %28 = vector.extract_strided_slice %27 {offsets = [0, 0], sizes = [8, 384], strides = [1, 1]} : vector<8x768xf32> to vector<8x384xf32>
    %cst_18 = arith.constant -6.000000e+01 : f32
    %cst_19 = arith.constant 6.000000e+01 : f32
    %29 = vector.broadcast %cst_18 : f32 to vector<8x384xf32>
    %30 = arith.maximumf %29, %28 : vector<8x384xf32>
    %31 = vector.broadcast %cst_19 : f32 to vector<8x384xf32>
    %32 = arith.minimumf %31, %30 : vector<8x384xf32>
    %cst_20 = arith.constant 0.000000e+00 : f32
    %33 = vector.broadcast %cst_20 : f32 to vector<8x384xf32>
    %34 = arith.subf %33, %32 : vector<8x384xf32>
    %35 = math.exp %34 : vector<8x384xf32>
    %cst_21 = arith.constant 1.000000e+00 : f32
    %36 = vector.broadcast %cst_21 : f32 to vector<8x384xf32>
    %37 = arith.addf %36, %35 : vector<8x384xf32>
    %38 = tpu.reciprocal %37 {approx = true} : vector<8x384xf32> -> vector<8x384xf32>
    %39 = vector.extract_strided_slice %27 {offsets = [0, 384], sizes = [8, 384], strides = [1, 1]} : vector<8x768xf32> to vector<8x384xf32>
    %cst_22 = arith.constant 0.000000e+00 : f32
    %40 = vector.broadcast %cst_22 : f32 to vector<8x384xf32>
    %41 = arith.maximumf %39, %40 : vector<8x384xf32>
    %42 = arith.mulf %41, %38 : vector<8x384xf32>
    %43 = arith.truncf %42 : vector<8x384xf32> to vector<8x384xbf16>
    %c0_23 = arith.constant 0 : index
    %c0_24 = arith.constant 0 : index
    %44 = vector.load %arg8[%c0_23, %c0_24] : memref<384x128xbf16, #tpu.memory_space<vmem>>, vector<384x128xbf16>
    %cst_25 = arith.constant dense<0.000000e+00> : vector<8x128xf32>
    %45 = tpu.matmul %43, %44, %cst_25 {dimension_numbers = #tpu.dot_dimension_numbers<[1], [0], [0], [1], [0, 0, 1, 1], [], []>} : vector<8x384xbf16>, vector<384x128xbf16>, vector<8x128xf32> -> vector<8x128xf32>
    %c0_26 = arith.constant 0 : index
    %c0_27 = arith.constant 0 : index
    %46 = vector.load %arg9[%c0_26, %c0_27] : memref<1x128xf32, #tpu.memory_space<vmem>>, vector<1x128xf32>
    %47 = vector.broadcast %46 : vector<1x128xf32> to vector<8x128xf32>
    %48 = arith.addf %45, %47 : vector<8x128xf32>
    %49 = vector.extract_strided_slice %48 {offsets = [0, 8], sizes = [8, 4], strides = [1, 1]} : vector<8x128xf32> to vector<8x4xf32>
    %50 = vector.extract_strided_slice %49 {offsets = [0, 0], sizes = [4, 4], strides = [1, 1]} : vector<8x4xf32> to vector<4x4xf32>
    %51 = tpu.concatenate %50, %50 in 0 : vector<4x4xf32>, vector<4x4xf32> -> vector<8x4xf32>
    %52 = vector.extract_strided_slice %49 {offsets = [4, 0], sizes = [4, 4], strides = [1, 1]} : vector<8x4xf32> to vector<4x4xf32>
    %53 = tpu.concatenate %52, %52 in 0 : vector<4x4xf32>, vector<4x4xf32> -> vector<8x4xf32>
    %54 = tpu.concatenate %51, %53 in 1 : vector<8x4xf32>, vector<8x4xf32> -> vector<8x8xf32>
    %55 = vector.extract_strided_slice %48 {offsets = [0, 12], sizes = [8, 4], strides = [1, 1]} : vector<8x128xf32> to vector<8x4xf32>
    %56 = vector.extract_strided_slice %55 {offsets = [0, 0], sizes = [4, 4], strides = [1, 1]} : vector<8x4xf32> to vector<4x4xf32>
    %57 = tpu.concatenate %56, %56 in 0 : vector<4x4xf32>, vector<4x4xf32> -> vector<8x4xf32>
    %58 = vector.extract_strided_slice %55 {offsets = [4, 0], sizes = [4, 4], strides = [1, 1]} : vector<8x4xf32> to vector<4x4xf32>
    %59 = tpu.concatenate %58, %58 in 0 : vector<4x4xf32>, vector<4x4xf32> -> vector<8x4xf32>
    %60 = tpu.concatenate %57, %59 in 1 : vector<8x4xf32>, vector<8x4xf32> -> vector<8x8xf32>
    %61 = vector.extract_strided_slice %11 {offsets = [0, 0], sizes = [8, 1], strides = [1, 1]} : vector<8x2xf32> to vector<8x1xf32>
    %62 = vector.broadcast %61 : vector<8x1xf32> to vector<8x8xf32>
    %63 = arith.mulf %54, %62 : vector<8x8xf32>
    %64 = vector.extract_strided_slice %11 {offsets = [0, 1], sizes = [8, 1], strides = [1, 1]} : vector<8x2xf32> to vector<8x1xf32>
    %65 = vector.broadcast %64 : vector<8x1xf32> to vector<8x8xf32>
    %66 = arith.mulf %60, %65 : vector<8x8xf32>
    %67 = arith.addf %63, %66 : vector<8x8xf32>
    %68 = tpu.iota {dimensions = array<i32: 1>} : vector<8x8xi32>
    %69 = arith.sitofp %68 : vector<8x8xi32> to vector<8x8xf32>
    %cst_28 = arith.constant dense<0xFF800000> : vector<8xf32>
    %70 = vector.multi_reduction <maximumf>, %67, %cst_28 [1] : vector<8x8xf32> to vector<8xf32>
    %71 = vector.shape_cast %70 : vector<8xf32> to vector<8x1xf32>
    %72 = vector.broadcast %71 : vector<8x1xf32> to vector<8x8xf32>
    %73 = arith.cmpf oge, %67, %72 : vector<8x8xf32>
    %cst_29 = arith.constant 8.000000e+00 : f32
    %74 = vector.broadcast %cst_29 : f32 to vector<8x8xf32>
    %75 = arith.select %73, %69, %74 : vector<8x8xi1>, vector<8x8xf32>
    %cst_30 = arith.constant dense<0x7F800000> : vector<8xf32>
    %76 = vector.multi_reduction <minimumf>, %75, %cst_30 [1] : vector<8x8xf32> to vector<8xf32>
    %77 = vector.shape_cast %76 : vector<8xf32> to vector<8x1xf32>
    %78 = vector.broadcast %77 : vector<8x1xf32> to vector<8x8xf32>
    %79 = arith.cmpf oeq, %69, %78 : vector<8x8xf32>
    %80 = tpu.iota {dimensions = array<i32: 1>} : vector<8x128xi32>
    %cst_31 = arith.constant 0.000000e+00 : f32
    %81 = vector.broadcast %cst_31 : f32 to vector<8x8xf32>
    %82 = arith.select %79, %54, %81 : vector<8x8xi1>, vector<8x8xf32>
    %cst_32 = arith.constant dense<0.000000e+00> : vector<8xf32>
    %83 = vector.multi_reduction <add>, %82, %cst_32 [1] : vector<8x8xf32> to vector<8xf32>
    %84 = vector.shape_cast %83 : vector<8xf32> to vector<8x1xf32>
    %c16_i32 = arith.constant 16 : i32
    %85 = vector.broadcast %c16_i32 : i32 to vector<8x128xi32>
    %86 = arith.cmpi eq, %80, %85 : vector<8x128xi32>
    %87 = vector.shape_cast %84 : vector<8x1xf32> to vector<8x1xf32>
    %88 = vector.broadcast %87 : vector<8x1xf32> to vector<8x128xf32>
    %89 = arith.select %86, %88, %48 : vector<8x128xi1>, vector<8x128xf32>
    %cst_33 = arith.constant 0.000000e+00 : f32
    %90 = vector.broadcast %cst_33 : f32 to vector<8x8xf32>
    %91 = arith.select %79, %60, %90 : vector<8x8xi1>, vector<8x8xf32>
    %cst_34 = arith.constant dense<0.000000e+00> : vector<8xf32>
    %92 = vector.multi_reduction <add>, %91, %cst_34 [1] : vector<8x8xf32> to vector<8xf32>
    %93 = vector.shape_cast %92 : vector<8xf32> to vector<8x1xf32>
    %c17_i32 = arith.constant 17 : i32
    %94 = vector.broadcast %c17_i32 : i32 to vector<8x128xi32>
    %95 = arith.cmpi eq, %80, %94 : vector<8x128xi32>
    %96 = vector.shape_cast %93 : vector<8x1xf32> to vector<8x1xf32>
    %97 = vector.broadcast %96 : vector<8x1xf32> to vector<8x128xf32>
    %98 = arith.select %95, %97, %89 : vector<8x128xi1>, vector<8x128xf32>
    %99 = vector.extract_strided_slice %98 {offsets = [0, 0], sizes = [4, 128], strides = [1, 1]} : vector<8x128xf32> to vector<4x128xf32>
    %c0_35 = arith.constant 0 : index
    %c0_36 = arith.constant 0 : index
    %c0_37 = arith.constant 0 : index
    %100 = vector.load %arg10[%c0_35, %c0_36, %c0_37] : memref<2x4x128xf32, #tpu.memory_space<vmem>>, vector<1x4x128xf32>
    %101 = vector.shape_cast %100 : vector<1x4x128xf32> to vector<4x128xf32>
    %102 = vector.shape_cast %99 : vector<4x128xf32> to vector<1x4x128xf32>
    tpu.vector_store %arg10[%c0_35, %c0_36, %c0_37], %102 {strides = array<i32>} : memref<2x4x128xf32, #tpu.memory_space<vmem>>, vector<1x4x128xf32>,
    %103 = vector.extract_strided_slice %98 {offsets = [4, 0], sizes = [4, 128], strides = [1, 1]} : vector<8x128xf32> to vector<4x128xf32>
    %c1 = arith.constant 1 : index
    %c0_38 = arith.constant 0 : index
    %c0_39 = arith.constant 0 : index
    %104 = vector.load %arg10[%c1, %c0_38, %c0_39] : memref<2x4x128xf32, #tpu.memory_space<vmem>>, vector<1x4x128xf32>
    %105 = vector.shape_cast %104 : vector<1x4x128xf32> to vector<4x128xf32>
    %106 = vector.shape_cast %103 : vector<4x128xf32> to vector<1x4x128xf32>
    tpu.vector_store %arg10[%c1, %c0_38, %c0_39], %106 {strides = array<i32>} : memref<2x4x128xf32, #tpu.memory_space<vmem>>, vector<1x4x128xf32>,
    return
  }
  func.func @transform_0(%arg0: i32) -> (i32, i32, i32) {
    %c0_i32 = arith.constant 0 : i32
    %c0_i32_0 = arith.constant 0 : i32
    %c0_i32_1 = arith.constant 0 : i32
    return %c0_i32, %arg0, %c0_i32_0 : i32, i32, i32
  }
  func.func @transform_1(%arg0: i32) -> (i32, i32, i32) {
    %c0_i32 = arith.constant 0 : i32
    %c0_i32_0 = arith.constant 0 : i32
    %c0_i32_1 = arith.constant 0 : i32
    return %c0_i32, %arg0, %c0_i32_0 : i32, i32, i32
  }
  func.func @transform_2(%arg0: i32) -> (i32, i32) {
    %c0_i32 = arith.constant 0 : i32
    %c0_i32_0 = arith.constant 0 : i32
    %c0_i32_1 = arith.constant 0 : i32
    return %c0_i32, %c0_i32_0 : i32, i32
  }
  func.func @transform_3(%arg0: i32) -> (i32, i32) {
    %c0_i32 = arith.constant 0 : i32
    %c0_i32_0 = arith.constant 0 : i32
    %c0_i32_1 = arith.constant 0 : i32
    return %c0_i32, %c0_i32_0 : i32, i32
  }
  func.func @transform_4(%arg0: i32) -> (i32, i32) {
    %c0_i32 = arith.constant 0 : i32
    %c0_i32_0 = arith.constant 0 : i32
    %c0_i32_1 = arith.constant 0 : i32
    return %c0_i32, %c0_i32_0 : i32, i32
  }
  func.func @transform_5(%arg0: i32) -> (i32, i32) {
    %c0_i32 = arith.constant 0 : i32
    %c0_i32_0 = arith.constant 0 : i32
    %c0_i32_1 = arith.constant 0 : i32
    return %c0_i32, %c0_i32_0 : i32, i32
  }
  func.func @transform_6(%arg0: i32) -> (i32, i32) {
    %c0_i32 = arith.constant 0 : i32
    %c0_i32_0 = arith.constant 0 : i32
    %c0_i32_1 = arith.constant 0 : i32
    return %c0_i32, %c0_i32_0 : i32, i32
  }
  func.func @transform_7(%arg0: i32) -> (i32, i32) {
    %c0_i32 = arith.constant 0 : i32
    %c0_i32_0 = arith.constant 0 : i32
    %c0_i32_1 = arith.constant 0 : i32
    return %c0_i32, %c0_i32_0 : i32, i32
  }
  func.func @transform_8(%arg0: i32) -> (i32, i32) {
    %c0_i32 = arith.constant 0 : i32
    %c0_i32_0 = arith.constant 0 : i32
    %c0_i32_1 = arith.constant 0 : i32
    return %c0_i32, %c0_i32_0 : i32, i32
  }
  func.func @transform_9(%arg0: i32) -> (i32, i32, i32) {
    %c0_i32 = arith.constant 0 : i32
    %c0_i32_0 = arith.constant 0 : i32
    %c0_i32_1 = arith.constant 0 : i32
    return %c0_i32, %arg0, %c0_i32_0 : i32, i32, i32
  }
}

</mosaic_0001>

<llo_original>
// kernel: tpu_custom_call.1
$region0: #{tpu_custom_call.1}
  #allocation0 [shape = 'u32[]', space=smem, size = 0x4, offset = 0x4, fixed_abs, tag = 'smem constant byte address 0x4 - core index']
  #allocation1 [shape = 'u32[72,128]{1,0:T(1,128)}', space=vmem, size = 0x9000, scoped, tag = 'internal scratch']
  %s0 = inlined_call_operand.vmem [shape: f32[2,4,4], index: 0, kind: input, shape index: {}]
  %s1 = inlined_call_operand.vmem [shape: f32[2,4,2], index: 1, kind: input, shape index: {}]
  %s2 = inlined_call_operand.hbm [shape: f32[4,256], index: 2, kind: input, shape index: {}]
  %s3 = inlined_call_operand.hbm [shape: f32[2,256], index: 3, kind: input, shape index: {}]
  %s4 = inlined_call_operand.hbm [shape: f32[1,256], index: 4, kind: input, shape index: {}]
  %s5 = inlined_call_operand.hbm [shape: bf16[256,768], index: 5, kind: input, shape index: {}]
  %s6 = inlined_call_operand.vmem [shape: f32[1,768], index: 6, kind: input, shape index: {}]
  %s7 = inlined_call_operand.hbm [shape: bf16[384,128], index: 7, kind: input, shape index: {}]
  %s8 = inlined_call_operand.vmem [shape: f32[1,128], index: 8, kind: input, shape index: {}]
  %s9 = inlined_call_operand.hbm [shape: f32[2,4,128], index: 9, kind: output, shape index: {}]
  %s10 = sld [smem:[#allocation0]]
  $region66: #{tpu_custom_call.1} parent=0
    _
  %s12 = ssub.s32 1, %s10
  %s13 = scalar_select 0, %s12, %s10
  $region1: #{tpu_custom_call.1} parent=0
    #allocation2 [shape = 'u8[4096]{0}', space=vmem, size = 0x1000, scoped, tag = 'input window, operand 2, single buffered']
    #allocation3 [shape = 's32[1]{0}', space=sflag, size = 0x4, scoped, tag = 'scoped memory for tpu_custom_call.1']
    #allocation4 [shape = 's32[1]{0}', space=sflag, size = 0x4, scoped, tag = 'scoped memory for tpu_custom_call.1']
    #allocation5 [shape = 'u8[2048]{0}', space=vmem, size = 0x800, scoped, tag = 'input window, operand 3, single buffered']
    #allocation6 [shape = 's32[1]{0}', space=sflag, size = 0x4, scoped, tag = 'scoped memory for tpu_custom_call.1']
    #allocation7 [shape = 'u8[1024]{0}', space=vmem, size = 0x400, scoped, tag = 'input window, operand 4, single buffered']
    #allocation8 [shape = 'u8[393216]{0}', space=vmem, size = 0x60000, scoped, tag = 'input window, operand 5, single buffered']
    #allocation9 [shape = 's32[1]{0}', space=sflag, size = 0x4, scoped, tag = 'scoped memory for tpu_custom_call.1']
    #allocation10 [shape = 'u8[98304]{0}', space=vmem, size = 0x18000, scoped, tag = 'input window, operand 7, single buffered']
    #allocation11 [shape = 'u8[4096]{0}', space=vmem, size = 0x1000, scoped, tag = 'output window, operand 0, single buffered']
    %14 = vsyncpa [#allocation3], 0
    %15 = vsyncpa [#allocation6], 0
    %16 = vsyncpa [#allocation9], 0
    %17 = vsyncpa [#allocation4], 0
    // Predicated region
    $region2: #{tpu_custom_call.1} parent=1 // pred_check
      _
    $region3: #{tpu_custom_call.1} parent=1 // pred_check_branch
      %19 = sbr.rel (0) target = $region5
    $region4: #{tpu_custom_call.1} parent=1 // pred_region
      _
    $region5: #{tpu_custom_call.1} parent=1 // pred_fallthru
      _
    // Predicated region
    $region6: #{tpu_custom_call.1} parent=1 // pred_check
      _
    $region7: #{tpu_custom_call.1} parent=1 // pred_check_branch
      %21 = sbr.rel (0) target = $region9
    $region8: #{tpu_custom_call.1} parent=1 // pred_region
      _
    $region9: #{tpu_custom_call.1} parent=1 // pred_fallthru
      _
    // Predicated region
    $region10: #{tpu_custom_call.1} parent=1 // pred_check
      _
    $region11: #{tpu_custom_call.1} parent=1 // pred_check_branch
      %23 = sbr.rel (0) target = $region13
    $region12: #{tpu_custom_call.1} parent=1 // pred_region
      %25 = vsyncadd [#allocation3], 0
      %s27 = sshll.u32 %s2, 4
      %s28 = int_to_ptr.hbm [resolvable:$true] %s27
      %s29 = sshll.u32 [#allocation2], 4
      %s30 = int_to_ptr.vmem [resolvable:$true] %s29
      %32 = dma.hbm_to_vmem [thread:$0]  %s28, 128, %s30, [#allocation3]
    $region13: #{tpu_custom_call.1} parent=1 // pred_fallthru
      _
    // Predicated region
    $region14: #{tpu_custom_call.1} parent=1 // pred_check
      _
    $region15: #{tpu_custom_call.1} parent=1 // pred_check_branch
      %34 = sbr.rel (0) target = $region17
    $region16: #{tpu_custom_call.1} parent=1 // pred_region
      %36 = vsyncadd [#allocation6], 0
      %s38 = sshll.u32 %s3, 4
      %s39 = int_to_ptr.hbm [resolvable:$true] %s38
      %s40 = sshll.u32 [#allocation5], 4
      %s41 = int_to_ptr.vmem [resolvable:$true] %s40
      %43 = dma.hbm_to_vmem [thread:$0]  %s39, 64, %s41, [#allocation6]
    $region17: #{tpu_custom_call.1} parent=1 // pred_fallthru
      _
    // Predicated region
    $region18: #{tpu_custom_call.1} parent=1 // pred_check
      _
    $region19: #{tpu_custom_call.1} parent=1 // pred_check_branch
      %45 = sbr.rel (0) target = $region21
    $region20: #{tpu_custom_call.1} parent=1 // pred_region
      %47 = vsyncadd [#allocation6], 0
      %s49 = sshll.u32 %s4, 4
      %s50 = int_to_ptr.hbm [resolvable:$true] %s49
      %s51 = sshll.u32 [#allocation7], 4
      %s52 = int_to_ptr.vmem [resolvable:$true] %s51
      %54 = dma.hbm_to_vmem [thread:$0]  %s50, 32, %s52, [#allocation6]
    $region21: #{tpu_custom_call.1} parent=1 // pred_fallthru
      _
    // Predicated region
    $region22: #{tpu_custom_call.1} parent=1 // pred_check
      _
    $region23: #{tpu_custom_call.1} parent=1 // pred_check_branch
      %56 = sbr.rel (0) target = $region25
    $region24: #{tpu_custom_call.1} parent=1 // pred_region
      %58 = vsyncadd [#allocation9], 0
      %s59 = sshll.u32 %s5, 4
      %s60 = int_to_ptr.hbm [resolvable:$true] %s59
      %s61 = sshll.u32 [#allocation8], 4
      %s62 = int_to_ptr.vmem [resolvable:$true] %s61
      %67 = dma.hbm_to_vmem [thread:$0]  %s60, 12288, %s62, [#allocation9], 384, 384, 24
    $region25: #{tpu_custom_call.1} parent=1 // pred_fallthru
      _
    // Predicated region
    $region26: #{tpu_custom_call.1} parent=1 // pred_check
      _
    $region27: #{tpu_custom_call.1} parent=1 // pred_check_branch
      %69 = sbr.rel (0) target = $region29
    $region28: #{tpu_custom_call.1} parent=1 // pred_region
      _
    $region29: #{tpu_custom_call.1} parent=1 // pred_fallthru
      _
    // Predicated region
    $region30: #{tpu_custom_call.1} parent=1 // pred_check
      _
    $region31: #{tpu_custom_call.1} parent=1 // pred_check_branch
      %71 = sbr.rel (0) target = $region33
    $region32: #{tpu_custom_call.1} parent=1 // pred_region
      %73 = vsyncadd [#allocation9], 0
      %s74 = sshll.u32 %s7, 4
      %s75 = int_to_ptr.hbm [resolvable:$true] %s74
      %s76 = sshll.u32 [#allocation10], 4
      %s77 = int_to_ptr.vmem [resolvable:$true] %s76
      %82 = dma.hbm_to_vmem [thread:$0]  %s75, 3072, %s77, [#allocation9], 64, 64, 4
    $region33: #{tpu_custom_call.1} parent=1 // pred_fallthru
      _
    // Predicated region
    $region34: #{tpu_custom_call.1} parent=1 // pred_check
      _
    $region35: #{tpu_custom_call.1} parent=1 // pred_check_branch
      %84 = sbr.rel (0) target = $region37
    $region36: #{tpu_custom_call.1} parent=1 // pred_region
      _
    $region37: #{tpu_custom_call.1} parent=1 // pred_fallthru
      _
    // Predicated region
    $region38: #{tpu_custom_call.1} parent=1 // pred_check
      _
    $region39: #{tpu_custom_call.1} parent=1 // pred_check_branch
      %86 = sbr.rel (0) target = $region41
    $region40: #{tpu_custom_call.1} parent=1 // pred_region
      %88 = dma.done [#allocation3], 128
    $region41: #{tpu_custom_call.1} parent=1 // pred_fallthru
      _
    // Predicated region
    $region42: #{tpu_custom_call.1} parent=1 // pred_check
      _
    $region43: #{tpu_custom_call.1} parent=1 // pred_check_branch
      %90 = sbr.rel (0) target = $region45
    $region44: #{tpu_custom_call.1} parent=1 // pred_region
      %92 = dma.done [#allocation6], 64
    $region45: #{tpu_custom_call.1} parent=1 // pred_fallthru
      _
    // Predicated region
    $region46: #{tpu_custom_call.1} parent=1 // pred_check
      _
    $region47: #{tpu_custom_call.1} parent=1 // pred_check_branch
      %94 = sbr.rel (0) target = $region49
    $region48: #{tpu_custom_call.1} parent=1 // pred_region
      %96 = dma.done [#allocation6], 32
    $region49: #{tpu_custom_call.1} parent=1 // pred_fallthru
      _
    // Predicated region
    $region50: #{tpu_custom_call.1} parent=1 // pred_check
      _
    $region51: #{tpu_custom_call.1} parent=1 // pred_check_branch
      %98 = sbr.rel (0) target = $region53
    $region52: #{tpu_custom_call.1} parent=1 // pred_region
      %100 = dma.done [#allocation9], 12288
    $region53: #{tpu_custom_call.1} parent=1 // pred_fallthru
      _
    // Predicated region
    $region54: #{tpu_custom_call.1} parent=1 // pred_check
      _
    $region55: #{tpu_custom_call.1} parent=1 // pred_check_branch
      %102 = sbr.rel (0) target = $region57
    $region56: #{tpu_custom_call.1} parent=1 // pred_region
      %104 = dma.done [#allocation9], 3072
    $region57: #{tpu_custom_call.1} parent=1 // pred_fallthru
      _
    %v105 = vld [vmem:[%s0] sm:$0xf]
    %v106 = vld [vmem:[%s0 + $0x4] sm:$0xf]
    %v108 = vrot.slane %v106, 4
    %vm110 = vcmask 1043456
    %v111 = vsel %vm110, %v105, %v108
    %v112 = vld [vmem:[%s1] sm:$0xf]
    %v113 = vld [vmem:[%s1 + $0x4] sm:$0xf]
    %v115 = vrot.slane %v113, 4
    %v117 = vsel %vm110, %v112, %v115
    %v118 = vld [vmem:[#allocation2] sm:$0xff]
    %v119 = vld [vmem:[#allocation5] sm:$0xf]
    %121 = vst [vmem:[#allocation1] ss:$4 sm:$0xff] %v119
    %v122 = vld.sshfl [vmem:[#allocation1] sm:$0xff pattern:$0x73625140]
    %v123 = vld.sshfl [vmem:[#allocation1 + $0x8] sm:$0xff pattern:$0x73625140]
    %vm124 = vcmask 15360
    %v126 = vsel %vm124, %v117, 0
    %vm128 = vcmask 1041408
    %v129 = vsel %vm128, %v122, 0
    %v131 = vsel %vm128, %v123, 0
    %133 = vmatpush.msra.mxu0 0.0
    %134 = vmatpush.msra.mxu0 0.0
    %135 = vmatpush.msra.mxu0 0.0
    %136 = vmatpush.msra.mxu0 0.0
    %137 = vmatpush.msra.mxu0 0.0
    %138 = vmatpush.msra.mxu0 0.0
    %139 = vmatpush.msra.mxu0 0.0
    %140 = vmatpush.msra.mxu0 0.0
    %141 = vmatpush.msra.mxu0 0.0
    %142 = vmatpush.msra.mxu0 0.0
    %143 = vmatpush.msra.mxu0 0.0
    %144 = vmatpush.msra.mxu0 0.0
    %145 = vmatpush.msra.mxu0 0.0
    %146 = vmatpush.msra.mxu0 0.0
    %147 = vmatpush.msra.mxu0 0.0
    %148 = vmatpush.msra.mxu0 %v129
    %149 = vmatmul.f32.gmra.mxu0 %v126
    %v150 = vpop.f32.mrf.mxu0
    %v151 = vadd.f32 0.0, %v150
    %152 = vdwg.mxu0
    %153 = vmatpush.msra.mxu0 0.0
    %154 = vmatpush.msra.mxu0 0.0
    %155 = vmatpush.msra.mxu0 0.0
    %156 = vmatpush.msra.mxu0 0.0
    %157 = vmatpush.msra.mxu0 0.0
    %158 = vmatpush.msra.mxu0 0.0
    %159 = vmatpush.msra.mxu0 0.0
    %160 = vmatpush.msra.mxu0 0.0
    %161 = vmatpush.msra.mxu0 0.0
    %162 = vmatpush.msra.mxu0 0.0
    %163 = vmatpush.msra.mxu0 0.0
    %164 = vmatpush.msra.mxu0 0.0
    %165 = vmatpush.msra.mxu0 0.0
    %166 = vmatpush.msra.mxu0 0.0
    %167 = vmatpush.msra.mxu0 0.0
    %168 = vmatpush.msra.mxu0 %v131
    %169 = vmatmul.f32.gmra.mxu0 %v126
    %v170 = vpop.f32.mrf.mxu0
    %v171 = vadd.f32 0.0, %v170
    %172 = vdwg.mxu0
    %174 = vst [vmem:[#allocation1] ss:$2 sm:$0xff] %v118
    %v175 = vld.sshfl [vmem:[#allocation1] sm:$0xff pattern:$0x75316420]
    %v176 = vld.sshfl [vmem:[#allocation1 + $0x8] sm:$0xff pattern:$0x75316420]
    %vm177 = vcmask 31744
    %v179 = vsel %vm177, %v111, 0
    %v181 = vsel %vm110, %v175, 0
    %v183 = vsel %vm110, %v176, 0
    %185 = vmatpush.msra.mxu0 0.0
    %186 = vmatpush.msra.mxu0 0.0
    %187 = vmatpush.msra.mxu0 0.0
    %188 = vmatpush.msra.mxu0 0.0
    %189 = vmatpush.msra.mxu0 0.0
    %190 = vmatpush.msra.mxu0 0.0
    %191 = vmatpush.msra.mxu0 0.0
    %192 = vmatpush.msra.mxu0 0.0
    %193 = vmatpush.msra.mxu0 0.0
    %194 = vmatpush.msra.mxu0 0.0
    %195 = vmatpush.msra.mxu0 0.0
    %196 = vmatpush.msra.mxu0 0.0
    %197 = vmatpush.msra.mxu0 0.0
    %198 = vmatpush.msra.mxu0 0.0
    %199 = vmatpush.msra.mxu0 0.0
    %200 = vmatpush.msra.mxu0 %v181
    %201 = vmatmul.f32.gmra.mxu0 %v179
    %v202 = vpop.f32.mrf.mxu0
    %v203 = vadd.f32 %v151, %v202
    %204 = vdwg.mxu0
    %205 = vmatpush.msra.mxu0 0.0
    %206 = vmatpush.msra.mxu0 0.0
    %207 = vmatpush.msra.mxu0 0.0
    %208 = vmatpush.msra.mxu0 0.0
    %209 = vmatpush.msra.mxu0 0.0
    %210 = vmatpush.msra.mxu0 0.0
    %211 = vmatpush.msra.mxu0 0.0
    %212 = vmatpush.msra.mxu0 0.0
    %213 = vmatpush.msra.mxu0 0.0
    %214 = vmatpush.msra.mxu0 0.0
    %215 = vmatpush.msra.mxu0 0.0
    %216 = vmatpush.msra.mxu0 0.0
    %217 = vmatpush.msra.mxu0 0.0
    %218 = vmatpush.msra.mxu0 0.0
    %219 = vmatpush.msra.mxu0 0.0
    %220 = vmatpush.msra.mxu0 %v183
    %221 = vmatmul.f32.gmra.mxu0 %v179
    %v222 = vpop.f32.mrf.mxu0
    %v223 = vadd.f32 %v171, %v222
    %224 = vdwg.mxu0
    %v225 = vld [vmem:[#allocation7] sm:$0x3]
    %v227 = vperm.slane %v225, 0
    %v228 = vperm.slane %v225, 1
    %v231 = vadd.f32 %v203, %v227
    %v232 = vadd.f32 %v223, %v228
    %v233 = vmax.f32 %v231, 0.0
    %v234 = vmax.f32 %v232, 0.0
    %v235 = vpack.c.bf16 %v233, %v233
    %v236 = vpack.c.bf16 %v234, %v234
    %v237 = vld [vmem:[#allocation8] sm:$0xff]
    %v238 = vld [vmem:[#allocation8 + $0x8] sm:$0xff]
    %v239 = vld [vmem:[#allocation8 + $0x10] sm:$0xff]
    %v240 = vld [vmem:[#allocation8 + $0x18] sm:$0xff]
    %v241 = vld [vmem:[#allocation8 + $0x20] sm:$0xff]
    %v242 = vld [vmem:[#allocation8 + $0x28] sm:$0xff]
    %v243 = vld [vmem:[#allocation8 + $0x30] sm:$0xff]
    %v244 = vld [vmem:[#allocation8 + $0x38] sm:$0xff]
    %v245 = vld [vmem:[#allocation8 + $0x40] sm:$0xff]
    %v246 = vld [vmem:[#allocation8 + $0x48] sm:$0xff]
    %v247 = vld [vmem:[#allocation8 + $0x50] sm:$0xff]
    %v248 = vld [vmem:[#allocation8 + $0x58] sm:$0xff]
    %v249 = vld [vmem:[#allocation8 + $0x60] sm:$0xff]
    %v250 = vld [vmem:[#allocation8 + $0x68] sm:$0xff]
    %v251 = vld [vmem:[#allocation8 + $0x70] sm:$0xff]
    %v252 = vld [vmem:[#allocation8 + $0x78] sm:$0xff]
    %v253 = vld [vmem:[#allocation8 + $0x80] sm:$0xff]
    %v254 = vld [vmem:[#allocation8 + $0x88] sm:$0xff]
    %v255 = vld [vmem:[#allocation8 + $0x90] sm:$0xff]
    %v256 = vld [vmem:[#allocation8 + $0x98] sm:$0xff]
    %v257 = vld [vmem:[#allocation8 + $0xa0] sm:$0xff]
    %v258 = vld [vmem:[#allocation8 + $0xa8] sm:$0xff]
    %v259 = vld [vmem:[#allocation8 + $0xb0] sm:$0xff]
    %v260 = vld [vmem:[#allocation8 + $0xb8] sm:$0xff]
    %v261 = vld [vmem:[#allocation8 + $0xc0] sm:$0xff]
    %v262 = vld [vmem:[#allocation8 + $0xc8] sm:$0xff]
    %v263 = vld [vmem:[#allocation8 + $0xd0] sm:$0xff]
    %v264 = vld [vmem:[#allocation8 + $0xd8] sm:$0xff]
    %v265 = vld [vmem:[#allocation8 + $0xe0] sm:$0xff]
    %v266 = vld [vmem:[#allocation8 + $0xe8] sm:$0xff]
    %v267 = vld [vmem:[#allocation8 + $0xf0] sm:$0xff]
    %v268 = vld [vmem:[#allocation8 + $0xf8] sm:$0xff]
    %v269 = vld [vmem:[#allocation8 + $0x100] sm:$0xff]
    %v270 = vld [vmem:[#allocation8 + $0x108] sm:$0xff]
    %v271 = vld [vmem:[#allocation8 + $0x110] sm:$0xff]
    %v272 = vld [vmem:[#allocation8 + $0x118] sm:$0xff]
    %v273 = vld [vmem:[#allocation8 + $0x120] sm:$0xff]
    %v274 = vld [vmem:[#allocation8 + $0x128] sm:$0xff]
    %v275 = vld [vmem:[#allocation8 + $0x130] sm:$0xff]
    %v276 = vld [vmem:[#allocation8 + $0x138] sm:$0xff]
    %v277 = vld [vmem:[#allocation8 + $0x140] sm:$0xff]
    %v278 = vld [vmem:[#allocation8 + $0x148] sm:$0xff]
    %v279 = vld [vmem:[#allocation8 + $0x150] sm:$0xff]
    %v280 = vld [vmem:[#allocation8 + $0x158] sm:$0xff]
    %v281 = vld [vmem:[#allocation8 + $0x160] sm:$0xff]
    %v282 = vld [vmem:[#allocation8 + $0x168] sm:$0xff]
    %v283 = vld [vmem:[#allocation8 + $0x170] sm:$0xff]
    %v284 = vld [vmem:[#allocation8 + $0x178] sm:$0xff]
    %v285 = vld [vmem:[#allocation8 + $0x180] sm:$0xff]
    %v286 = vld [vmem:[#allocation8 + $0x188] sm:$0xff]
    %v287 = vld [vmem:[#allocation8 + $0x190] sm:$0xff]
    %v288 = vld [vmem:[#allocation8 + $0x198] sm:$0xff]
    %v289 = vld [vmem:[#allocation8 + $0x1a0] sm:$0xff]
    %v290 = vld [vmem:[#allocation8 + $0x1a8] sm:$0xff]
    %v291 = vld [vmem:[#allocation8 + $0x1b0] sm:$0xff]
    %v292 = vld [vmem:[#allocation8 + $0x1b8] sm:$0xff]
    %v293 = vld [vmem:[#allocation8 + $0x1c0] sm:$0xff]
    %v294 = vld [vmem:[#allocation8 + $0x1c8] sm:$0xff]
    %v295 = vld [vmem:[#allocation8 + $0x1d0] sm:$0xff]
    %v296 = vld [vmem:[#allocation8 + $0x1d8] sm:$0xff]
    %v297 = vld [vmem:[#allocation8 + $0x1e0] sm:$0xff]
    %v298 = vld [vmem:[#allocation8 + $0x1e8] sm:$0xff]
    %v299 = vld [vmem:[#allocation8 + $0x1f0] sm:$0xff]
    %v300 = vld [vmem:[#allocation8 + $0x1f8] sm:$0xff]
    %v301 = vld [vmem:[#allocation8 + $0x200] sm:$0xff]
    %v302 = vld [vmem:[#allocation8 + $0x208] sm:$0xff]
    %v303 = vld [vmem:[#allocation8 + $0x210] sm:$0xff]
    %v304 = vld [vmem:[#allocation8 + $0x218] sm:$0xff]
    %v305 = vld [vmem:[#allocation8 + $0x220] sm:$0xff]
    %v306 = vld [vmem:[#allocation8 + $0x228] sm:$0xff]
    %v307 = vld [vmem:[#allocation8 + $0x230] sm:$0xff]
    %v308 = vld [vmem:[#allocation8 + $0x238] sm:$0xff]
    %v309 = vld [vmem:[#allocation8 + $0x240] sm:$0xff]
    %v310 = vld [vmem:[#allocation8 + $0x248] sm:$0xff]
    %v311 = vld [vmem:[#allocation8 + $0x250] sm:$0xff]
    %v312 = vld [vmem:[#allocation8 + $0x258] sm:$0xff]
    %v313 = vld [vmem:[#allocation8 + $0x260] sm:$0xff]
    %v314 = vld [vmem:[#allocation8 + $0x268] sm:$0xff]
    %v315 = vld [vmem:[#allocation8 + $0x270] sm:$0xff]
    %v316 = vld [vmem:[#allocation8 + $0x278] sm:$0xff]
    %v317 = vld [vmem:[#allocation8 + $0x280] sm:$0xff]
    %v318 = vld [vmem:[#allocation8 + $0x288] sm:$0xff]
    %v319 = vld [vmem:[#allocation8 + $0x290] sm:$0xff]
    %v320 = vld [vmem:[#allocation8 + $0x298] sm:$0xff]
    %v321 = vld [vmem:[#allocation8 + $0x2a0] sm:$0xff]
    %v322 = vld [vmem:[#allocation8 + $0x2a8] sm:$0xff]
    %v323 = vld [vmem:[#allocation8 + $0x2b0] sm:$0xff]
    %v324 = vld [vmem:[#allocation8 + $0x2b8] sm:$0xff]
    %v325 = vld [vmem:[#allocation8 + $0x2c0] sm:$0xff]
    %v326 = vld [vmem:[#allocation8 + $0x2c8] sm:$0xff]
    %v327 = vld [vmem:[#allocation8 + $0x2d0] sm:$0xff]
    %v328 = vld [vmem:[#allocation8 + $0x2d8] sm:$0xff]
    %v329 = vld [vmem:[#allocation8 + $0x2e0] sm:$0xff]
    %v330 = vld [vmem:[#allocation8 + $0x2e8] sm:$0xff]
    %v331 = vld [vmem:[#allocation8 + $0x2f0] sm:$0xff]
    %v332 = vld [vmem:[#allocation8 + $0x2f8] sm:$0xff]
    %v333 = vld [vmem:[%s6] sm:$0x3f]
    %v335 = vperm.slane %v333, 0
    %v336 = vperm.slane %v333, 1
    %v337 = vperm.slane %v333, 2
    %v338 = vperm.slane %v333, 3
    %v339 = vperm.slane %v333, 4
    %v340 = vperm.slane %v333, 5
    %v443 = vunpack.c.l.b16 %v237
    %v444 = vunpack.c.h.b16 %v237
    %v445 = vunpack.c.l.b16 %v238
    %v446 = vunpack.c.h.b16 %v238
    %v447 = vunpack.c.l.b16 %v239
    %v448 = vunpack.c.h.b16 %v239
    %v449 = vunpack.c.l.b16 %v240
    %v450 = vunpack.c.h.b16 %v240
    %v451 = vunpack.c.l.b16 %v241
    %v452 = vunpack.c.h.b16 %v241
    %v453 = vunpack.c.l.b16 %v242
    %v454 = vunpack.c.h.b16 %v242
    %v455 = vunpack.c.l.b16 %v243
    %v456 = vunpack.c.h.b16 %v243
    %v457 = vunpack.c.l.b16 %v244
    %v458 = vunpack.c.h.b16 %v244
    %v459 = vunpack.c.l.b16 %v245
    %v460 = vunpack.c.h.b16 %v245
    %v461 = vunpack.c.l.b16 %v246
    %v462 = vunpack.c.h.b16 %v246
    %v463 = vunpack.c.l.b16 %v247
    %v464 = vunpack.c.h.b16 %v247
    %v465 = vunpack.c.l.b16 %v248
    %v466 = vunpack.c.h.b16 %v248
    %v467 = vunpack.c.l.b16 %v249
    %v468 = vunpack.c.h.b16 %v249
    %v469 = vunpack.c.l.b16 %v250
    %v470 = vunpack.c.h.b16 %v250
    %v471 = vunpack.c.l.b16 %v251
    %v472 = vunpack.c.h.b16 %v251
    %v473 = vunpack.c.l.b16 %v252
    %v474 = vunpack.c.h.b16 %v252
    %v475 = vunpack.c.l.b16 %v253
    %v476 = vunpack.c.h.b16 %v253
    %v477 = vunpack.c.l.b16 %v254
    %v478 = vunpack.c.h.b16 %v254
    %v479 = vunpack.c.l.b16 %v255
    %v480 = vunpack.c.h.b16 %v255
    %v481 = vunpack.c.l.b16 %v256
    %v482 = vunpack.c.h.b16 %v256
    %v483 = vunpack.c.l.b16 %v257
    %v484 = vunpack.c.h.b16 %v257
    %v485 = vunpack.c.l.b16 %v258
    %v486 = vunpack.c.h.b16 %v258
    %v487 = vunpack.c.l.b16 %v259
    %v488 = vunpack.c.h.b16 %v259
    %v489 = vunpack.c.l.b16 %v260
    %v490 = vunpack.c.h.b16 %v260
    %v491 = vunpack.c.l.b16 %v261
    %v492 = vunpack.c.h.b16 %v261
    %v493 = vunpack.c.l.b16 %v262
    %v494 = vunpack.c.h.b16 %v262
    %v495 = vunpack.c.l.b16 %v263
    %v496 = vunpack.c.h.b16 %v263
    %v497 = vunpack.c.l.b16 %v264
    %v498 = vunpack.c.h.b16 %v264
    %v499 = vunpack.c.l.b16 %v265
    %v500 = vunpack.c.h.b16 %v265
    %v501 = vunpack.c.l.b16 %v266
    %v502 = vunpack.c.h.b16 %v266
    %v503 = vunpack.c.l.b16 %v267
    %v504 = vunpack.c.h.b16 %v267
    %v505 = vunpack.c.l.b16 %v268
    %v506 = vunpack.c.h.b16 %v268
    %v507 = vunpack.c.l.b16 %v269
    %v508 = vunpack.c.h.b16 %v269
    %v509 = vunpack.c.l.b16 %v270
    %v510 = vunpack.c.h.b16 %v270
    %v511 = vunpack.c.l.b16 %v271
    %v512 = vunpack.c.h.b16 %v271
    %v513 = vunpack.c.l.b16 %v272
    %v514 = vunpack.c.h.b16 %v272
    %v515 = vunpack.c.l.b16 %v273
    %v516 = vunpack.c.h.b16 %v273
    %v517 = vunpack.c.l.b16 %v274
    %v518 = vunpack.c.h.b16 %v274
    %v519 = vunpack.c.l.b16 %v275
    %v520 = vunpack.c.h.b16 %v275
    %v521 = vunpack.c.l.b16 %v276
    %v522 = vunpack.c.h.b16 %v276
    %v523 = vunpack.c.l.b16 %v277
    %v524 = vunpack.c.h.b16 %v277
    %v525 = vunpack.c.l.b16 %v278
    %v526 = vunpack.c.h.b16 %v278
    %v527 = vunpack.c.l.b16 %v279
    %v528 = vunpack.c.h.b16 %v279
    %v529 = vunpack.c.l.b16 %v280
    %v530 = vunpack.c.h.b16 %v280
    %v531 = vunpack.c.l.b16 %v281
    %v532 = vunpack.c.h.b16 %v281
    %v533 = vunpack.c.l.b16 %v282
    %v534 = vunpack.c.h.b16 %v282
    %v535 = vunpack.c.l.b16 %v283
    %v536 = vunpack.c.h.b16 %v283
    %v537 = vunpack.c.l.b16 %v284
    %v538 = vunpack.c.h.b16 %v284
    %v539 = vunpack.c.l.b16 %v285
    %v540 = vunpack.c.h.b16 %v285
    %v541 = vunpack.c.l.b16 %v286
    %v542 = vunpack.c.h.b16 %v286
    %v543 = vunpack.c.l.b16 %v287
    %v544 = vunpack.c.h.b16 %v287
    %v545 = vunpack.c.l.b16 %v288
    %v546 = vunpack.c.h.b16 %v288
    %v547 = vunpack.c.l.b16 %v289
    %v548 = vunpack.c.h.b16 %v289
    %v549 = vunpack.c.l.b16 %v290
    %v550 = vunpack.c.h.b16 %v290
    %v551 = vunpack.c.l.b16 %v291
    %v552 = vunpack.c.h.b16 %v291
    %v553 = vunpack.c.l.b16 %v292
    %v554 = vunpack.c.h.b16 %v292
    %v555 = vunpack.c.l.b16 %v293
    %v556 = vunpack.c.h.b16 %v293
    %v557 = vunpack.c.l.b16 %v294
    %v558 = vunpack.c.h.b16 %v294
    %v559 = vunpack.c.l.b16 %v295
    %v560 = vunpack.c.h.b16 %v295
    %v561 = vunpack.c.l.b16 %v296
    %v562 = vunpack.c.h.b16 %v296
    %v563 = vunpack.c.l.b16 %v297
    %v564 = vunpack.c.h.b16 %v297
    %v565 = vunpack.c.l.b16 %v298
    %v566 = vunpack.c.h.b16 %v298
    %v567 = vunpack.c.l.b16 %v299
    %v568 = vunpack.c.h.b16 %v299
    %v569 = vunpack.c.l.b16 %v300
    %v570 = vunpack.c.h.b16 %v300
    %v571 = vunpack.c.l.b16 %v301
    %v572 = vunpack.c.h.b16 %v301
    %v573 = vunpack.c.l.b16 %v302
    %v574 = vunpack.c.h.b16 %v302
    %v575 = vunpack.c.l.b16 %v303
    %v576 = vunpack.c.h.b16 %v303
    %v577 = vunpack.c.l.b16 %v304
    %v578 = vunpack.c.h.b16 %v304
    %v579 = vunpack.c.l.b16 %v305
    %v580 = vunpack.c.h.b16 %v305
    %v581 = vunpack.c.l.b16 %v306
    %v582 = vunpack.c.h.b16 %v306
    %v583 = vunpack.c.l.b16 %v307
    %v584 = vunpack.c.h.b16 %v307
    %v585 = vunpack.c.l.b16 %v308
    %v586 = vunpack.c.h.b16 %v308
    %v587 = vunpack.c.l.b16 %v309
    %v588 = vunpack.c.h.b16 %v309
    %v589 = vunpack.c.l.b16 %v310
    %v590 = vunpack.c.h.b16 %v310
    %v591 = vunpack.c.l.b16 %v311
    %v592 = vunpack.c.h.b16 %v311
    %v593 = vunpack.c.l.b16 %v312
    %v594 = vunpack.c.h.b16 %v312
    %v595 = vunpack.c.l.b16 %v313
    %v596 = vunpack.c.h.b16 %v313
    %v597 = vunpack.c.l.b16 %v314
    %v598 = vunpack.c.h.b16 %v314
    %v599 = vunpack.c.l.b16 %v315
    %v600 = vunpack.c.h.b16 %v315
    %v601 = vunpack.c.l.b16 %v316
    %v602 = vunpack.c.h.b16 %v316
    %v603 = vunpack.c.l.b16 %v317
    %v604 = vunpack.c.h.b16 %v317
    %v605 = vunpack.c.l.b16 %v318
    %v606 = vunpack.c.h.b16 %v318
    %v607 = vunpack.c.l.b16 %v319
    %v608 = vunpack.c.h.b16 %v319
    %v609 = vunpack.c.l.b16 %v320
    %v610 = vunpack.c.h.b16 %v320
    %v611 = vunpack.c.l.b16 %v321
    %v612 = vunpack.c.h.b16 %v321
    %v613 = vunpack.c.l.b16 %v322
    %v614 = vunpack.c.h.b16 %v322
    %v615 = vunpack.c.l.b16 %v323
    %v616 = vunpack.c.h.b16 %v323
    %v617 = vunpack.c.l.b16 %v324
    %v618 = vunpack.c.h.b16 %v324
    %v619 = vunpack.c.l.b16 %v325
    %v620 = vunpack.c.h.b16 %v325
    %v621 = vunpack.c.l.b16 %v326
    %v622 = vunpack.c.h.b16 %v326
    %v623 = vunpack.c.l.b16 %v327
    %v624 = vunpack.c.h.b16 %v327
    %v625 = vunpack.c.l.b16 %v328
    %v626 = vunpack.c.h.b16 %v328
    %v627 = vunpack.c.l.b16 %v329
    %v628 = vunpack.c.h.b16 %v329
    %v629 = vunpack.c.l.b16 %v330
    %v630 = vunpack.c.h.b16 %v330
    %v631 = vunpack.c.l.b16 %v331
    %v632 = vunpack.c.h.b16 %v331
    %v633 = vunpack.c.l.b16 %v332
    %v634 = vunpack.c.h.b16 %v332
    %v635 = vpack.c.b16 %v449, %v443
    %v636 = vpack.c.b16 %v450, %v444
    %v637 = vpack.c.b16 %v451, %v445
    %v638 = vpack.c.b16 %v452, %v446
    %v639 = vpack.c.b16 %v453, %v447
    %v640 = vpack.c.b16 %v454, %v448
    %v641 = vpack.c.b16 %v461, %v455
    %v642 = vpack.c.b16 %v462, %v456
    %v643 = vpack.c.b16 %v463, %v457
    %v644 = vpack.c.b16 %v464, %v458
    %v645 = vpack.c.b16 %v465, %v459
    %v646 = vpack.c.b16 %v466, %v460
    %v647 = vpack.c.b16 %v473, %v467
    %v648 = vpack.c.b16 %v474, %v468
    %v649 = vpack.c.b16 %v475, %v469
    %v650 = vpack.c.b16 %v476, %v470
    %v651 = vpack.c.b16 %v477, %v471
    %v652 = vpack.c.b16 %v478, %v472
    %v653 = vpack.c.b16 %v485, %v479
    %v654 = vpack.c.b16 %v486, %v480
    %v655 = vpack.c.b16 %v487, %v481
    %v656 = vpack.c.b16 %v488, %v482
    %v657 = vpack.c.b16 %v489, %v483
    %v658 = vpack.c.b16 %v490, %v484
    %v659 = vpack.c.b16 %v497, %v491
    %v660 = vpack.c.b16 %v498, %v492
    %v661 = vpack.c.b16 %v499, %v493
    %v662 = vpack.c.b16 %v500, %v494
    %v663 = vpack.c.b16 %v501, %v495
    %v664 = vpack.c.b16 %v502, %v496
    %v665 = vpack.c.b16 %v509, %v503
    %v666 = vpack.c.b16 %v510, %v504
    %v667 = vpack.c.b16 %v511, %v505
    %v668 = vpack.c.b16 %v512, %v506
    %v669 = vpack.c.b16 %v513, %v507
    %v670 = vpack.c.b16 %v514, %v508
    %v671 = vpack.c.b16 %v521, %v515
    %v672 = vpack.c.b16 %v522, %v516
    %v673 = vpack.c.b16 %v523, %v517
    %v674 = vpack.c.b16 %v524, %v518
    %v675 = vpack.c.b16 %v525, %v519
    %v676 = vpack.c.b16 %v526, %v520
    %v677 = vpack.c.b16 %v533, %v527
    %v678 = vpack.c.b16 %v534, %v528
    %v679 = vpack.c.b16 %v535, %v529
    %v680 = vpack.c.b16 %v536, %v530
    %v681 = vpack.c.b16 %v537, %v531
    %v682 = vpack.c.b16 %v538, %v532
    %v683 = vpack.c.b16 %v545, %v539
    %v684 = vpack.c.b16 %v546, %v540
    %v685 = vpack.c.b16 %v547, %v541
    %v686 = vpack.c.b16 %v548, %v542
    %v687 = vpack.c.b16 %v549, %v543
    %v688 = vpack.c.b16 %v550, %v544
    %v689 = vpack.c.b16 %v557, %v551
    %v690 = vpack.c.b16 %v558, %v552
    %v691 = vpack.c.b16 %v559, %v553
    %v692 = vpack.c.b16 %v560, %v554
    %v693 = vpack.c.b16 %v561, %v555
    %v694 = vpack.c.b16 %v562, %v556
    %v695 = vpack.c.b16 %v569, %v563
    %v696 = vpack.c.b16 %v570, %v564
    %v697 = vpack.c.b16 %v571, %v565
    %v698 = vpack.c.b16 %v572, %v566
    %v699 = vpack.c.b16 %v573, %v567
    %v700 = vpack.c.b16 %v574, %v568
    %v701 = vpack.c.b16 %v581, %v575
    %v702 = vpack.c.b16 %v582, %v576
    %v703 = vpack.c.b16 %v583, %v577
    %v704 = vpack.c.b16 %v584, %v578
    %v705 = vpack.c.b16 %v585, %v579
    %v706 = vpack.c.b16 %v586, %v580
    %v707 = vpack.c.b16 %v593, %v587
    %v708 = vpack.c.b16 %v594, %v588
    %v709 = vpack.c.b16 %v595, %v589
    %v710 = vpack.c.b16 %v596, %v590
    %v711 = vpack.c.b16 %v597, %v591
    %v712 = vpack.c.b16 %v598, %v592
    %v713 = vpack.c.b16 %v605, %v599
    %v714 = vpack.c.b16 %v606, %v600
    %v715 = vpack.c.b16 %v607, %v601
    %v716 = vpack.c.b16 %v608, %v602
    %v717 = vpack.c.b16 %v609, %v603
    %v718 = vpack.c.b16 %v610, %v604
    %v719 = vpack.c.b16 %v617, %v611
    %v720 = vpack.c.b16 %v618, %v612
    %v721 = vpack.c.b16 %v619, %v613
    %v722 = vpack.c.b16 %v620, %v614
    %v723 = vpack.c.b16 %v621, %v615
    %v724 = vpack.c.b16 %v622, %v616
    %v725 = vpack.c.b16 %v629, %v623
    %v726 = vpack.c.b16 %v630, %v624
    %v727 = vpack.c.b16 %v631, %v625
    %v728 = vpack.c.b16 %v632, %v626
    %v729 = vpack.c.b16 %v633, %v627
    %v730 = vpack.c.b16 %v634, %v628
    %827 = vmatpush.bf16.msra.mxu0 %v677
    %828 = vmatpush.bf16.msra.mxu0 %v671
    %829 = vmatpush.bf16.msra.mxu0 %v665
    %830 = vmatpush.bf16.msra.mxu0 %v659
    %831 = vmatpush.bf16.msra.mxu0 %v653
    %832 = vmatpush.bf16.msra.mxu0 %v647
    %833 = vmatpush.bf16.msra.mxu0 %v641
    %834 = vmatpush.bf16.msra.mxu0 %v635
    %835 = vmatmul.bf16.gmra.mxu0 %v235
    %v836 = vpop.f32.mrf.mxu0
    %v837 = vadd.f32 %v335, %v836
    %v838 = vpop.f32.mrf.mxu0
    %839 = vdwg.mxu0
    %840 = vmatpush.bf16.msra.mxu0 %v725
    %841 = vmatpush.bf16.msra.mxu0 %v719
    %842 = vmatpush.bf16.msra.mxu0 %v713
    %843 = vmatpush.bf16.msra.mxu0 %v707
    %844 = vmatpush.bf16.msra.mxu0 %v701
    %845 = vmatpush.bf16.msra.mxu0 %v695
    %846 = vmatpush.bf16.msra.mxu0 %v689
    %847 = vmatpush.bf16.msra.mxu0 %v683
    %848 = vmatmul.bf16.gmra.mxu0 %v236
    %v849 = vpop.f32.mrf.mxu0
    %v850 = vadd.f32 %v837, %v849
    %v851 = vpop.f32.mrf.mxu0
    %852 = vdwg.mxu0
    %853 = vmatpush.bf16.msra.mxu0 %v678
    %854 = vmatpush.bf16.msra.mxu0 %v672
    %855 = vmatpush.bf16.msra.mxu0 %v666
    %856 = vmatpush.bf16.msra.mxu0 %v660
    %857 = vmatpush.bf16.msra.mxu0 %v654
    %858 = vmatpush.bf16.msra.mxu0 %v648
    %859 = vmatpush.bf16.msra.mxu0 %v642
    %860 = vmatpush.bf16.msra.mxu0 %v636
    %861 = vmatmul.bf16.gmra.mxu0 %v235
    %v862 = vpop.f32.mrf.mxu0
    %v863 = vadd.f32 %v336, %v862
    %v864 = vpop.f32.mrf.mxu0
    %865 = vdwg.mxu0
    %866 = vmatpush.bf16.msra.mxu0 %v726
    %867 = vmatpush.bf16.msra.mxu0 %v720
    %868 = vmatpush.bf16.msra.mxu0 %v714
    %869 = vmatpush.bf16.msra.mxu0 %v708
    %870 = vmatpush.bf16.msra.mxu0 %v702
    %871 = vmatpush.bf16.msra.mxu0 %v696
    %872 = vmatpush.bf16.msra.mxu0 %v690
    %873 = vmatpush.bf16.msra.mxu0 %v684
    %874 = vmatmul.bf16.gmra.mxu0 %v236
    %v875 = vpop.f32.mrf.mxu0
    %v876 = vadd.f32 %v863, %v875
    %v877 = vpop.f32.mrf.mxu0
    %878 = vdwg.mxu0
    %879 = vmatpush.bf16.msra.mxu0 %v679
    %880 = vmatpush.bf16.msra.mxu0 %v673
    %881 = vmatpush.bf16.msra.mxu0 %v667
    %882 = vmatpush.bf16.msra.mxu0 %v661
    %883 = vmatpush.bf16.msra.mxu0 %v655
    %884 = vmatpush.bf16.msra.mxu0 %v649
    %885 = vmatpush.bf16.msra.mxu0 %v643
    %886 = vmatpush.bf16.msra.mxu0 %v637
    %887 = vmatmul.bf16.gmra.mxu0 %v235
    %v888 = vpop.f32.mrf.mxu0
    %v889 = vadd.f32 %v337, %v888
    %v890 = vpop.f32.mrf.mxu0
    %891 = vdwg.mxu0
    %892 = vmatpush.bf16.msra.mxu0 %v727
    %893 = vmatpush.bf16.msra.mxu0 %v721
    %894 = vmatpush.bf16.msra.mxu0 %v715
    %895 = vmatpush.bf16.msra.mxu0 %v709
    %896 = vmatpush.bf16.msra.mxu0 %v703
    %897 = vmatpush.bf16.msra.mxu0 %v697
    %898 = vmatpush.bf16.msra.mxu0 %v691
    %899 = vmatpush.bf16.msra.mxu0 %v685
    %900 = vmatmul.bf16.gmra.mxu0 %v236
    %v901 = vpop.f32.mrf.mxu0
    %v902 = vadd.f32 %v889, %v901
    %v903 = vpop.f32.mrf.mxu0
    %904 = vdwg.mxu0
    %905 = vmatpush.bf16.msra.mxu0 %v680
    %906 = vmatpush.bf16.msra.mxu0 %v674
    %907 = vmatpush.bf16.msra.mxu0 %v668
    %908 = vmatpush.bf16.msra.mxu0 %v662
    %909 = vmatpush.bf16.msra.mxu0 %v656
    %910 = vmatpush.bf16.msra.mxu0 %v650
    %911 = vmatpush.bf16.msra.mxu0 %v644
    %912 = vmatpush.bf16.msra.mxu0 %v638
    %913 = vmatmul.bf16.gmra.mxu0 %v235
    %v914 = vpop.f32.mrf.mxu0
    %v915 = vadd.f32 %v338, %v914
    %v916 = vpop.f32.mrf.mxu0
    %917 = vdwg.mxu0
    %918 = vmatpush.bf16.msra.mxu0 %v728
    %919 = vmatpush.bf16.msra.mxu0 %v722
    %920 = vmatpush.bf16.msra.mxu0 %v716
    %921 = vmatpush.bf16.msra.mxu0 %v710
    %922 = vmatpush.bf16.msra.mxu0 %v704
    %923 = vmatpush.bf16.msra.mxu0 %v698
    %924 = vmatpush.bf16.msra.mxu0 %v692
    %925 = vmatpush.bf16.msra.mxu0 %v686
    %926 = vmatmul.bf16.gmra.mxu0 %v236
    %v927 = vpop.f32.mrf.mxu0
    %v928 = vadd.f32 %v915, %v927
    %v929 = vpop.f32.mrf.mxu0
    %930 = vdwg.mxu0
    %931 = vmatpush.bf16.msra.mxu0 %v681
    %932 = vmatpush.bf16.msra.mxu0 %v675
    %933 = vmatpush.bf16.msra.mxu0 %v669
    %934 = vmatpush.bf16.msra.mxu0 %v663
    %935 = vmatpush.bf16.msra.mxu0 %v657
    %936 = vmatpush.bf16.msra.mxu0 %v651
    %937 = vmatpush.bf16.msra.mxu0 %v645
    %938 = vmatpush.bf16.msra.mxu0 %v639
    %939 = vmatmul.bf16.gmra.mxu0 %v235
    %v940 = vpop.f32.mrf.mxu0
    %v941 = vadd.f32 %v339, %v940
    %v942 = vpop.f32.mrf.mxu0
    %943 = vdwg.mxu0
    %944 = vmatpush.bf16.msra.mxu0 %v729
    %945 = vmatpush.bf16.msra.mxu0 %v723
    %946 = vmatpush.bf16.msra.mxu0 %v717
    %947 = vmatpush.bf16.msra.mxu0 %v711
    %948 = vmatpush.bf16.msra.mxu0 %v705
    %949 = vmatpush.bf16.msra.mxu0 %v699
    %950 = vmatpush.bf16.msra.mxu0 %v693
    %951 = vmatpush.bf16.msra.mxu0 %v687
    %952 = vmatmul.bf16.gmra.mxu0 %v236
    %v953 = vpop.f32.mrf.mxu0
    %v954 = vadd.f32 %v941, %v953
    %v955 = vpop.f32.mrf.mxu0
    %956 = vdwg.mxu0
    %957 = vmatpush.bf16.msra.mxu0 %v682
    %958 = vmatpush.bf16.msra.mxu0 %v676
    %959 = vmatpush.bf16.msra.mxu0 %v670
    %960 = vmatpush.bf16.msra.mxu0 %v664
    %961 = vmatpush.bf16.msra.mxu0 %v658
    %962 = vmatpush.bf16.msra.mxu0 %v652
    %963 = vmatpush.bf16.msra.mxu0 %v646
    %964 = vmatpush.bf16.msra.mxu0 %v640
    %965 = vmatmul.bf16.gmra.mxu0 %v235
    %v966 = vpop.f32.mrf.mxu0
    %v967 = vadd.f32 %v340, %v966
    %v968 = vpop.f32.mrf.mxu0
    %969 = vdwg.mxu0
    %970 = vmatpush.bf16.msra.mxu0 %v730
    %971 = vmatpush.bf16.msra.mxu0 %v724
    %972 = vmatpush.bf16.msra.mxu0 %v718
    %973 = vmatpush.bf16.msra.mxu0 %v712
    %974 = vmatpush.bf16.msra.mxu0 %v706
    %975 = vmatpush.bf16.msra.mxu0 %v700
    %976 = vmatpush.bf16.msra.mxu0 %v694
    %977 = vmatpush.bf16.msra.mxu0 %v688
    %978 = vmatmul.bf16.gmra.mxu0 %v236
    %v979 = vpop.f32.mrf.mxu0
    %v980 = vadd.f32 %v967, %v979
    %v981 = vpop.f32.mrf.mxu0
    %982 = vdwg.mxu0
    %v983 = vmax.f32 %v850, -60.0
    %v984 = vmax.f32 %v876, -60.0
    %v985 = vmax.f32 %v902, -60.0
    %v986 = vmin.f32 %v983, 60.0
    %v987 = vmin.f32 %v984, 60.0
    %v988 = vmin.f32 %v985, 60.0
    %v989 = vsub.f32 0.0, %v986
    %v990 = vsub.f32 0.0, %v987
    %v991 = vsub.f32 0.0, %v988
    %v992 = vmul.f32 %v989, 1.442695
    %v993 = vpow.pop %v992
    %v994 = vmul.f32 %v990, 1.442695
    %v995 = vpow.pop %v994
    %v996 = vmul.f32 %v991, 1.442695
    %v997 = vpow.pop %v996
    %v998 = vadd.f32 %v993, 1.0
    %v999 = vadd.f32 %v995, 1.0
    %v1000 = vadd.f32 %v997, 1.0
    %v1001 = vrcp.pop %v998
    %v1002 = vrcp.pop %v999
    %v1003 = vrcp.pop %v1000
    %v1004 = vmax.f32 %v928, 0.0
    %v1005 = vmax.f32 %v954, 0.0
    %v1006 = vmax.f32 %v980, 0.0
    %v1007 = vmul.f32 %v1004, %v1001
    %v1008 = vmul.f32 %v1005, %v1002
    %v1009 = vmul.f32 %v1006, %v1003
    %v1010 = vpack.c.bf16 %v1007, %v1007
    %v1011 = vpack.c.bf16 %v1008, %v1008
    %v1012 = vpack.c.bf16 %v1009, %v1009
    %v1013 = vld [vmem:[#allocation10] sm:$0xf]
    %v1014 = vld [vmem:[#allocation10 + $0x4] sm:$0xf]
    %v1015 = vld [vmem:[#allocation10 + $0x8] sm:$0xf]
    %v1016 = vld [vmem:[#allocation10 + $0xc] sm:$0xf]
    %v1017 = vld [vmem:[#allocation10 + $0x10] sm:$0xf]
    %v1018 = vld [vmem:[#allocation10 + $0x14] sm:$0xf]
    %v1019 = vld [vmem:[#allocation10 + $0x18] sm:$0xf]
    %v1020 = vld [vmem:[#allocation10 + $0x1c] sm:$0xf]
    %v1021 = vld [vmem:[#allocation10 + $0x20] sm:$0xf]
    %v1022 = vld [vmem:[#allocation10 + $0x24] sm:$0xf]
    %v1023 = vld [vmem:[#allocation10 + $0x28] sm:$0xf]
    %v1024 = vld [vmem:[#allocation10 + $0x2c] sm:$0xf]
    %v1025 = vld [vmem:[#allocation10 + $0x30] sm:$0xf]
    %v1026 = vld [vmem:[#allocation10 + $0x34] sm:$0xf]
    %v1027 = vld [vmem:[#allocation10 + $0x38] sm:$0xf]
    %v1028 = vld [vmem:[#allocation10 + $0x3c] sm:$0xf]
    %v1029 = vld [vmem:[#allocation10 + $0x40] sm:$0xf]
    %v1030 = vld [vmem:[#allocation10 + $0x44] sm:$0xf]
    %v1031 = vld [vmem:[#allocation10 + $0x48] sm:$0xf]
    %v1032 = vld [vmem:[#allocation10 + $0x4c] sm:$0xf]
    %v1033 = vld [vmem:[#allocation10 + $0x50] sm:$0xf]
    %v1034 = vld [vmem:[#allocation10 + $0x54] sm:$0xf]
    %v1035 = vld [vmem:[#allocation10 + $0x58] sm:$0xf]
    %v1036 = vld [vmem:[#allocation10 + $0x5c] sm:$0xf]
    %v1037 = vld [vmem:[#allocation10 + $0x60] sm:$0xf]
    %v1038 = vld [vmem:[#allocation10 + $0x64] sm:$0xf]
    %v1039 = vld [vmem:[#allocation10 + $0x68] sm:$0xf]
    %v1040 = vld [vmem:[#allocation10 + $0x6c] sm:$0xf]
    %v1041 = vld [vmem:[#allocation10 + $0x70] sm:$0xf]
    %v1042 = vld [vmem:[#allocation10 + $0x74] sm:$0xf]
    %v1043 = vld [vmem:[#allocation10 + $0x78] sm:$0xf]
    %v1044 = vld [vmem:[#allocation10 + $0x7c] sm:$0xf]
    %v1045 = vld [vmem:[#allocation10 + $0x80] sm:$0xf]
    %v1046 = vld [vmem:[#allocation10 + $0x84] sm:$0xf]
    %v1047 = vld [vmem:[#allocation10 + $0x88] sm:$0xf]
    %v1048 = vld [vmem:[#allocation10 + $0x8c] sm:$0xf]
    %v1049 = vld [vmem:[#allocation10 + $0x90] sm:$0xf]
    %v1050 = vld [vmem:[#allocation10 + $0x94] sm:$0xf]
    %v1051 = vld [vmem:[#allocation10 + $0x98] sm:$0xf]
    %v1052 = vld [vmem:[#allocation10 + $0x9c] sm:$0xf]
    %v1053 = vld [vmem:[#allocation10 + $0xa0] sm:$0xf]
    %v1054 = vld [vmem:[#allocation10 + $0xa4] sm:$0xf]
    %v1055 = vld [vmem:[#allocation10 + $0xa8] sm:$0xf]
    %v1056 = vld [vmem:[#allocation10 + $0xac] sm:$0xf]
    %v1057 = vld [vmem:[#allocation10 + $0xb0] sm:$0xf]
    %v1058 = vld [vmem:[#allocation10 + $0xb4] sm:$0xf]
    %v1059 = vld [vmem:[#allocation10 + $0xb8] sm:$0xf]
    %v1060 = vld [vmem:[#allocation10 + $0xbc] sm:$0xf]
    %v1061 = vld [vmem:[%s8] sm:$0x1]
    %v1063 = vperm.slane %v1061, 0
    %v1113 = vunpack.c.l.b16 %v1013
    %v1114 = vunpack.c.l.b16 %v1014
    %v1115 = vunpack.c.l.b16 %v1015
    %v1116 = vunpack.c.l.b16 %v1016
    %v1117 = vunpack.c.l.b16 %v1017
    %v1118 = vunpack.c.l.b16 %v1018
    %v1119 = vunpack.c.l.b16 %v1019
    %v1120 = vunpack.c.l.b16 %v1020
    %v1121 = vunpack.c.l.b16 %v1021
    %v1122 = vunpack.c.l.b16 %v1022
    %v1123 = vunpack.c.l.b16 %v1023
    %v1124 = vunpack.c.l.b16 %v1024
    %v1125 = vunpack.c.l.b16 %v1025
    %v1126 = vunpack.c.l.b16 %v1026
    %v1127 = vunpack.c.l.b16 %v1027
    %v1128 = vunpack.c.l.b16 %v1028
    %v1129 = vunpack.c.l.b16 %v1029
    %v1130 = vunpack.c.l.b16 %v1030
    %v1131 = vunpack.c.l.b16 %v1031
    %v1132 = vunpack.c.l.b16 %v1032
    %v1133 = vunpack.c.l.b16 %v1033
    %v1134 = vunpack.c.l.b16 %v1034
    %v1135 = vunpack.c.l.b16 %v1035
    %v1136 = vunpack.c.l.b16 %v1036
    %v1137 = vunpack.c.l.b16 %v1037
    %v1138 = vunpack.c.l.b16 %v1038
    %v1139 = vunpack.c.l.b16 %v1039
    %v1140 = vunpack.c.l.b16 %v1040
    %v1141 = vunpack.c.l.b16 %v1041
    %v1142 = vunpack.c.l.b16 %v1042
    %v1143 = vunpack.c.l.b16 %v1043
    %v1144 = vunpack.c.l.b16 %v1044
    %v1145 = vunpack.c.l.b16 %v1045
    %v1146 = vunpack.c.l.b16 %v1046
    %v1147 = vunpack.c.l.b16 %v1047
    %v1148 = vunpack.c.l.b16 %v1048
    %v1149 = vunpack.c.l.b16 %v1049
    %v1150 = vunpack.c.l.b16 %v1050
    %v1151 = vunpack.c.l.b16 %v1051
    %v1152 = vunpack.c.l.b16 %v1052
    %v1153 = vunpack.c.l.b16 %v1053
    %v1154 = vunpack.c.l.b16 %v1054
    %v1155 = vunpack.c.l.b16 %v1055
    %v1156 = vunpack.c.l.b16 %v1056
    %v1157 = vunpack.c.l.b16 %v1057
    %v1158 = vunpack.c.l.b16 %v1058
    %v1159 = vunpack.c.l.b16 %v1059
    %v1160 = vunpack.c.l.b16 %v1060
    %v1161 = vpack.c.b16 %v1114, %v1113
    %v1162 = vpack.c.b16 %v1116, %v1115
    %v1163 = vpack.c.b16 %v1118, %v1117
    %v1164 = vpack.c.b16 %v1120, %v1119
    %v1165 = vpack.c.b16 %v1122, %v1121
    %v1166 = vpack.c.b16 %v1124, %v1123
    %v1167 = vpack.c.b16 %v1126, %v1125
    %v1168 = vpack.c.b16 %v1128, %v1127
    %v1169 = vpack.c.b16 %v1130, %v1129
    %v1170 = vpack.c.b16 %v1132, %v1131
    %v1171 = vpack.c.b16 %v1134, %v1133
    %v1172 = vpack.c.b16 %v1136, %v1135
    %v1173 = vpack.c.b16 %v1138, %v1137
    %v1174 = vpack.c.b16 %v1140, %v1139
    %v1175 = vpack.c.b16 %v1142, %v1141
    %v1176 = vpack.c.b16 %v1144, %v1143
    %v1177 = vpack.c.b16 %v1146, %v1145
    %v1178 = vpack.c.b16 %v1148, %v1147
    %v1179 = vpack.c.b16 %v1150, %v1149
    %v1180 = vpack.c.b16 %v1152, %v1151
    %v1181 = vpack.c.b16 %v1154, %v1153
    %v1182 = vpack.c.b16 %v1156, %v1155
    %v1183 = vpack.c.b16 %v1158, %v1157
    %v1184 = vpack.c.b16 %v1160, %v1159
    %1209 = vmatpush.bf16.msra.mxu0 %v1168
    %1210 = vmatpush.bf16.msra.mxu0 %v1167
    %1211 = vmatpush.bf16.msra.mxu0 %v1166
    %1212 = vmatpush.bf16.msra.mxu0 %v1165
    %1213 = vmatpush.bf16.msra.mxu0 %v1164
    %1214 = vmatpush.bf16.msra.mxu0 %v1163
    %1215 = vmatpush.bf16.msra.mxu0 %v1162
    %1216 = vmatpush.bf16.msra.mxu0 %v1161
    %1217 = vmatmul.bf16.gmra.mxu0 %v1010
    %v1218 = vpop.f32.mrf.mxu0
    %v1219 = vadd.f32 %v1063, %v1218
    %v1220 = vpop.f32.mrf.mxu0
    %1221 = vdwg.mxu0
    %1222 = vmatpush.bf16.msra.mxu0 %v1176
    %1223 = vmatpush.bf16.msra.mxu0 %v1175
    %1224 = vmatpush.bf16.msra.mxu0 %v1174
    %1225 = vmatpush.bf16.msra.mxu0 %v1173
    %1226 = vmatpush.bf16.msra.mxu0 %v1172
    %1227 = vmatpush.bf16.msra.mxu0 %v1171
    %1228 = vmatpush.bf16.msra.mxu0 %v1170
    %1229 = vmatpush.bf16.msra.mxu0 %v1169
    %1230 = vmatmul.bf16.gmra.mxu0 %v1011
    %v1231 = vpop.f32.mrf.mxu0
    %v1232 = vadd.f32 %v1219, %v1231
    %v1233 = vpop.f32.mrf.mxu0
    %1234 = vdwg.mxu0
    %1235 = vmatpush.bf16.msra.mxu0 %v1184
    %1236 = vmatpush.bf16.msra.mxu0 %v1183
    %1237 = vmatpush.bf16.msra.mxu0 %v1182
    %1238 = vmatpush.bf16.msra.mxu0 %v1181
    %1239 = vmatpush.bf16.msra.mxu0 %v1180
    %1240 = vmatpush.bf16.msra.mxu0 %v1179
    %1241 = vmatpush.bf16.msra.mxu0 %v1178
    %1242 = vmatpush.bf16.msra.mxu0 %v1177
    %1243 = vmatmul.bf16.gmra.mxu0 %v1012
    %v1244 = vpop.f32.mrf.mxu0
    %v1245 = vadd.f32 %v1232, %v1244
    %v1246 = vpop.f32.mrf.mxu0
    %1247 = vdwg.mxu0
    %v1249 = vrot.slane %v1245, 4
    %v1251 = vsel %vm110, %v1245, %v1249
    %v1252 = vsel %vm110, %v1249, %v1245
    %1254 = vrot.lane.b32.xlu0 %v1251, 120
    %v1255 = vpop.permute.xlu0 %1254
    %1258 = vrot.lane.b32.xlu0 %v1252, 124
    %v1259 = vpop.permute.xlu0 %1258
    %v1261 = vsel %vm177, %v1255, %v1259
    %1262 = vrot.lane.b32.xlu0 %v1251, 116
    %v1263 = vpop.permute.xlu0 %1262
    %1265 = vrot.lane.b32.xlu0 %v1252, 120
    %v1266 = vpop.permute.xlu0 %1265
    %v1268 = vsel %vm177, %v1263, %v1266
    %1269 = vset.pattern.permute.xlu0 0
    %1270 = vperm.xlu0 %1269, %v117
    %v1271 = vpop.permute.xlu0 %1270
    %v1273 = vmul.f32 %v1261, %v1271
    %1274 = vset.pattern.permute.xlu0 1
    %1275 = vperm.xlu0 %1274, %v117
    %v1276 = vpop.permute.xlu0 %1275
    %v1278 = vmul.f32 %v1268, %v1276
    %v1279 = vadd.f32 %v1273, %v1278
    %v1280 = vlaneseq
    %v1281 = vand.u32 %v1280, 127
    %v1282 = vcvt.s32.f32 %v1281
    %vm1283 = vcmask 64512
    %v1284 = vsel %vm1283, %v1279, -inf
    %1285 = vmax.xlane.f32.xlu0 %v1284
    %v1286 = vpop.xlane.xlu0 %1285
    %vm1287 = vcmp.ge.f32.partialorder %v1279, %v1286
    %v1288 = vsel %vm1287, %v1282, 8.0
    %v1289 = vsel %vm1283, %v1288, inf
    %1290 = vmin.xlane.f32.xlu0 %v1289
    %v1291 = vpop.xlane.xlu0 %1290
    %vm1292 = vcmp.eq.f32.partialorder %v1282, %v1291
    %v1293 = vsel %vm1292, %v1261, 0.0
    %v1294 = vsel %vm1283, %v1293, 0.0
    %1295 = vadd.xlane.f32.xlu0 %v1294
    %v1296 = vpop.xlane.xlu0 %1295
    %vm1297 = vcmp.eq.s32.totalorder %v1281, 16
    %v1298 = vsel %vm1297, %v1296, %v1245
    %v1299 = vsel %vm1292, %v1268, 0.0
    %v1300 = vsel %vm1283, %v1299, 0.0
    %1301 = vadd.xlane.f32.xlu0 %v1300
    %v1302 = vpop.xlane.xlu0 %1301
    %vm1303 = vcmp.eq.s32.totalorder %v1281, 17
    %v1304 = vsel %vm1303, %v1302, %v1298
    %1305 = vst [vmem:[#allocation11] sm:$0xf] %v1304
    %s1306 = scalar_lea.vmem [#allocation11], 4
    %1307 = vst [vmem:[%s1306 - $0x4] sm:$0xf0] %v1304
    // Predicated region
    $region58: #{tpu_custom_call.1} parent=1 // pred_check
      _
    $region59: #{tpu_custom_call.1} parent=1 // pred_check_branch
      %1309 = sbr.rel (0) target = $region61
    $region60: #{tpu_custom_call.1} parent=1 // pred_region
      %1311 = vsyncadd [#allocation4], 0
      %s1312 = sshll.u32 [#allocation11], 4
      %s1313 = int_to_ptr.vmem [resolvable:$true] %s1312
      %s1314 = sshll.u32 %s9, 4
      %s1315 = int_to_ptr.hbm [resolvable:$true] %s1314
      %1320 = dma.vmem_to_hbm [thread:$0]  %s1313, 128, %s1315, [#allocation4], 64, 64, 4
    $region61: #{tpu_custom_call.1} parent=1 // pred_fallthru
      _
    // Predicated region
    $region62: #{tpu_custom_call.1} parent=1 // pred_check
      _
    $region63: #{tpu_custom_call.1} parent=1 // pred_check_branch
      %1322 = sbr.rel (0) target = $region65
    $region64: #{tpu_custom_call.1} parent=1 // pred_region
      %1324 = dma.done [#allocation4], 128
    $region65: #{tpu_custom_call.1} parent=1 // pred_fallthru
      _
    %1325 = vsyncpa [#allocation3], 1
    %1326 = vsyncpa [#allocation6], 1
    %1327 = vsyncpa [#allocation9], 1
    %1328 = vsyncpa [#allocation4], 1

</llo_original>
